<compile_context>
chip_gen: v6e
topology: v6e:2x2x1
jax: 0.10.0
libtpu: 0.0.40
codegen_flags: <defaults>
</compile_context>

<pallas_src>
import numpy as np
import jax
import jax.numpy as jnp
from jax.experimental import pallas as pl
from jax.experimental.pallas import tpu as pltpu

BN_EPS = 1e-5
LANE = 128
SUBLANE = 8
MXU_DTYPE = jnp.bfloat16   # MXU-native on v5e/v6e/v7x; accumulation stays f32.


def _round_up(x, m):
    return ((x + m - 1) // m) * m


def _bf16_elementwise_ok():
    """v6e/v7x VPU+EUP support bf16; v5e (and older) do not -> keep f32 there."""
    try:
        kind = jax.devices()[0].device_kind.lower()
    except Exception:
        kind = ""
    return ("v6" in kind) or ("v7" in kind)


def _vmem_limit_bytes(resident_bytes):
    """~1.3x of actual resident bytes, floored for internal scratch, capped per
    generation (v7x has only 64 MiB VMEM; v5e/v6e have 128 MiB)."""
    try:
        cap = int(pltpu.get_tpu_info().vmem_capacity_bytes)
    except Exception:
        cap = 64 * 1024 * 1024
    want = int(1.3 * resident_bytes)
    return int(min(max(want, 4 * 1024 * 1024), int(0.75 * cap)))


def _layer_structure(inp_size, hid_size, num_layers):
    # Mirrors: np.linspace(inp_size, hid_size, num_layers + 1).astype(int)
    sizes = np.linspace(inp_size, hid_size, num_layers + 1).astype(int).tolist()
    enc_pairs = list(zip(sizes[:-1], sizes[1:]))
    dec_sizes = sizes[::-1]
    dec_pairs = list(zip(dec_sizes[:-1], dec_sizes[1:]))
    return enc_pairs, dec_pairs


def init_params(key, inp_size, hid_size, num_layers, include_bn=True):
    """Raw (unpadded, f32) per-layer parameters, PyTorch-style uniform init.

    Weights are stored pre-transposed as (in_features, out_features) so each
    layer is `h = h @ W + b`.
    """
    enc_pairs, dec_pairs = _layer_structure(inp_size, hid_size, num_layers)
    raw_layers = []
    for pairs in (enc_pairs, dec_pairs):        # encoder, then decoder
        for li, (fan_in, fan_out) in enumerate(pairs):
            key, kw, kb = jax.random.split(key, 3)
            bound = 1.0 / float(np.sqrt(fan_in))
            w = jax.random.uniform(kw, (fan_in, fan_out), jnp.float32, -bound, bound)
            b = jax.random.uniform(kb, (1, fan_out), jnp.float32, -bound, bound)
            is_last = li == len(pairs) - 1
            if is_last:
                raw_layers.append(dict(kind="lin_sigmoid", w=w, b=b))
            elif include_bn:
                raw_layers.append(dict(
                    kind="lin_bn_relu", w=w, b=b,
                    gamma=jnp.ones((1, fan_out), jnp.float32),
                    beta=jnp.zeros((1, fan_out), jnp.float32)))
            else:
                raw_layers.append(dict(kind="lin_relu", w=w, b=b))
    return raw_layers


def pack_params(raw_layers, inp_size):
    """Pack all params into one bf16 weight slab + one f32 vector slab.

    Every layer width is zero-padded to P = round_up(max_width, 128) so all
    intermediate activations / stores are lane-dense (no vst.msk partial
    stores).  Padded rows/cols/bias/gamma/beta are exactly zero (see packing
    invariant at the top of this file).
    """
    widths = [inp_size] + [l["w"].shape[1] for l in raw_layers]
    P = _round_up(max(widths), LANE)

    w_blocks, vec_rows, meta = [], [], []
    for l in raw_layers:
        fan_in, fan_out = l["w"].shape
        wp = jnp.zeros((P, P), jnp.float32).at[:fan_in, :fan_out].set(l["w"])
        w_blocks.append(wp)
        entry = dict(kind=l["kind"], b_row=len(vec_rows))
        vec_rows.append(jnp.zeros((1, P), jnp.float32).at[:, :fan_out].set(l["b"]))
        if l["kind"] == "lin_bn_relu":
            entry["g_row"] = len(vec_rows)
            vec_rows.append(jnp.zeros((1, P), jnp.float32).at[:, :fan_out].set(l["gamma"]))
            entry["bt_row"] = len(vec_rows)
            vec_rows.append(jnp.zeros((1, P), jnp.float32).at[:, :fan_out].set(l["beta"]))
        meta.append(entry)

    # bf16 weight slab: (n_linear_layers * P, P)
    w_packed = jnp.concatenate(w_blocks, axis=0).astype(MXU_DTYPE)
    # f32 vector slab: rows padded to a multiple of 8 sublanes
    n_vec = _round_up(len(vec_rows), SUBLANE)
    while len(vec_rows) < n_vec:
        vec_rows.append(jnp.zeros((1, P), jnp.float32))
    v_packed = jnp.concatenate(vec_rows, axis=0)
    return w_packed, v_packed, meta, P


def make_autoencoder_kernel(meta, P, *, bn_rows=None, ew_dtype=jnp.float32):
    """Whole encoder+decoder forward for one (rows, P) activation block.

    bn_rows: number of *real* batch rows contributing to BatchNorm statistics
    (padded rows are masked out); None means every row in the block is real.
    ew_dtype: elementwise dtype for plain-ReLU layers (bf16 on v6e/v7x).
    """
    has_bn = any(l["kind"] == "lin_bn_relu" for l in meta)

    def kernel(x_ref, w_ref, v_ref, out_ref):
        rows_in_block = x_ref.shape[0]
        h = x_ref[...]                                     # (rows, P) f32, lane-dense
        bn_mask, inv_n = None, None
        if has_bn:
            if bn_rows is not None and bn_rows != rows_in_block:
                row_ids = jax.lax.broadcasted_iota(jnp.int32, (rows_in_block, P), 0)
                bn_mask = (row_ids < bn_rows).astype(jnp.float32)
                inv_n = 1.0 / float(bn_rows)
            else:
                inv_n = 1.0 / float(rows_in_block)

        for li, layer in enumerate(meta):
            w = w_ref[pl.ds(li * P, P), :]                 # (P, P) bf16, static slice
            b = v_ref[pl.ds(layer["b_row"], 1), :]         # (1, P) f32
            # Linear: bf16 MXU matmul with f32 accumulation.
            acc = jnp.dot(h.astype(MXU_DTYPE), w,
                          preferred_element_type=jnp.float32)
            if layer["kind"] == "lin_bn_relu":
                g = v_ref[pl.ds(layer["g_row"], 1), :]
                bt = v_ref[pl.ds(layer["bt_row"], 1), :]
                hb = acc + b
                hm = hb if bn_mask is None else hb * bn_mask
                # Folded BN (training mode): one stats pass, one FMA to apply.
                mean = jnp.sum(hm, axis=0, keepdims=True) * inv_n
                mean_sq = jnp.sum(hm * hm, axis=0, keepdims=True) * inv_n
                var = jnp.maximum(mean_sq - mean * mean, 0.0)   # biased variance
                scale = g * jax.lax.rsqrt(var + BN_EPS)
                shift = bt - mean * scale
                h = jnp.maximum(hb * scale + shift, 0.0)        # BN + ReLU
            elif layer["kind"] == "lin_relu":
                # Generation-gated bf16 elementwise path (f32 on v5e).
                hb = acc.astype(ew_dtype) + b.astype(ew_dtype)
                h = jnp.maximum(hb, 0.0)
            else:  # lin_sigmoid (last layer of each MLP) -- keep f32 for accuracy
                h = jax.nn.sigmoid(acc + b)
        out_ref[...] = h.astype(out_ref.dtype)              # lane-dense store

    return kernel


def autoencoder_forward(x, w_packed, v_packed, meta, P, *, block_rows=256):
    batch, inp_size = x.shape
    n_lin = len(meta)
    has_bn = any(l["kind"] == "lin_bn_relu" for l in meta)
    ew_dtype = MXU_DTYPE if _bf16_elementwise_ok() else jnp.float32

    # Pad batch to a sublane multiple and width to the lane-dense P.
    batch_pad = _round_up(batch, SUBLANE)
    x_pad = jnp.pad(x.astype(jnp.float32),
                    ((0, batch_pad - batch), (0, P - inp_size)))

    w_bytes = int(np.prod(w_packed.shape)) * jnp.dtype(MXU_DTYPE).itemsize
    v_bytes = int(np.prod(v_packed.shape)) * 4
    x_bytes = batch_pad * P * 4
    out_bytes = batch_pad * P * 4
    n_sig = sum(1 for l in meta if l["kind"] == "lin_sigmoid")
    n_bn = sum(1 for l in meta if l["kind"] == "lin_bn_relu")
    cost = pl.CostEstimate(
        flops=2 * batch_pad * n_lin * P * P,
        transcendentals=n_sig * batch_pad * P + n_bn * P,   # sigmoid exps + BN rsqrt
        bytes_accessed=x_bytes + w_bytes + v_bytes + out_bytes,
    )

    # BN needs full-batch statistics -> gridless whole-batch block.
    # Without BN, tile the batch with a "parallel" grid (v7x: 2 TensorCores).
    use_grid = (not has_bn) and (batch_pad % block_rows == 0) \
        and (batch_pad // block_rows >= 2)
    rows_blk = block_rows if use_grid else batch_pad

    act_bytes = rows_blk * P * 4
    # Resident: slabs + (double-buffered x/out blocks if gridded) + activations.
    resident = w_bytes + v_bytes + (4 if use_grid else 2) * act_bytes + 4 * act_bytes
    vmem_limit = _vmem_limit_bytes(resident)

    kernel = make_autoencoder_kernel(
        meta, P, bn_rows=(batch if has_bn else None), ew_dtype=ew_dtype)

    if use_grid:
        n_vec = int(v_packed.shape[0])
        out_pad = pl.pallas_call(
            kernel,
            out_shape=jax.ShapeDtypeStruct((batch_pad, P), jnp.float32),
            grid_spec=pltpu.PrefetchScalarGridSpec(
                num_scalar_prefetch=0,
                grid=(batch_pad // block_rows,),
                in_specs=[
                    pl.BlockSpec((block_rows, P), lambda i: (i, 0)),
                    # Constant index_map -> slabs stay VMEM-resident across steps.
                    pl.BlockSpec((n_lin * P, P), lambda i: (0, 0)),
                    pl.BlockSpec((n_vec, P), lambda i: (0, 0)),
                ],
                out_specs=pl.BlockSpec((block_rows, P), lambda i: (i, 0)),
            ),
            compiler_params=pltpu.CompilerParams(
                dimension_semantics=("parallel",),
                vmem_limit_bytes=vmem_limit),
            cost_estimate=cost,
        )(x_pad, w_packed, v_packed)
    else:
        out_pad = pl.pallas_call(
            kernel,
            out_shape=jax.ShapeDtypeStruct((batch_pad, P), jnp.float32),
            in_specs=[pl.BlockSpec(memory_space=pltpu.MemorySpace.VMEM)] * 3,
            out_specs=pl.BlockSpec(memory_space=pltpu.MemorySpace.VMEM),
            compiler_params=pltpu.CompilerParams(vmem_limit_bytes=vmem_limit),
            cost_estimate=cost,
        )(x_pad, w_packed, v_packed)

    return out_pad[:batch, :inp_size]


def reference_forward(x, raw_layers, mxu_dtype=None, ew_dtype=jnp.float32):
    """Plain-JAX reference.  mxu_dtype=bf16 (+ matching ew_dtype) replicates the
    kernel's numerics; mxu_dtype=None is the full-f32 semantic reference."""
    h = x.astype(jnp.float32)
    for l in raw_layers:
        if mxu_dtype is not None:
            acc = jnp.dot(h.astype(mxu_dtype), l["w"].astype(mxu_dtype),
                          preferred_element_type=jnp.float32)
        else:
            acc = h @ l["w"]
        if l["kind"] == "lin_bn_relu":
            hb = acc + l["b"]
            mean = jnp.mean(hb, axis=0, keepdims=True)
            var = jnp.maximum(jnp.mean(hb * hb, axis=0, keepdims=True) - mean * mean, 0.0)
            scale = l["gamma"] * jax.lax.rsqrt(var + BN_EPS)
            shift = l["beta"] - mean * scale
            h = jnp.maximum(hb * scale + shift, 0.0)
        elif l["kind"] == "lin_relu":
            if mxu_dtype is not None:
                hb = acc.astype(ew_dtype) + l["b"].astype(ew_dtype)
            else:
                hb = acc + l["b"]
            h = jnp.maximum(hb, 0.0).astype(jnp.float32)
        else:  # lin_sigmoid
            h = jax.nn.sigmoid(acc + l["b"])
    return h


if __name__ == "__main__":
    key = jax.random.PRNGKey(0)
    bf16_ew = _bf16_elementwise_ok()

    # ---- Config 1: the spec's config (include_bn=1), batch-amortized MXU ----
    # batch=250 gives >=128 activation rows per matmul and exercises the
    # masked-BN-statistics path (padded to 256 sublane rows).
    batch, inp_size, hid_size, num_layers = 250, 64, 16, 2
    key, kx, kp = jax.random.split(key, 3)
    x = jax.random.normal(kx, (batch, inp_size), jnp.float32)
    raw = init_params(kp, inp_size, hid_size, num_layers, include_bn=True)
    w_p, v_p, meta, P = pack_params(raw, inp_size)

    out = jax.block_until_ready(autoencoder_forward(x, w_p, v_p, meta, P))
    assert out.shape == (batch, inp_size)
    assert bool(jnp.all(jnp.isfinite(out)))
    ref_same = reference_forward(x, raw, mxu_dtype=MXU_DTYPE, ew_dtype=jnp.float32)
    ref_f32 = reference_forward(x, raw)
    np.testing.assert_allclose(np.asarray(out), np.asarray(ref_same),
                               rtol=1e-3, atol=1e-3)
    np.testing.assert_allclose(np.asarray(out), np.asarray(ref_f32),
                               rtol=5e-2, atol=5e-2)

    # ---- Config 2: include_bn=0 -> "parallel" batch grid (2 x 256 rows) -----
    batch2 = 512
    key, kx2, kp2 = jax.random.split(key, 3)
    x2 = jax.random.normal(kx2, (batch2, inp_size), jnp.float32)
    raw2 = init_params(kp2, inp_size, hid_size, num_layers, include_bn=False)
    w_p2, v_p2, meta2, P2 = pack_params(raw2, inp_size)

    out2 = jax.block_until_ready(
        autoencoder_forward(x2, w_p2, v_p2, meta2, P2, block_rows=256))
    assert out2.shape == (batch2, inp_size)
    assert bool(jnp.all(jnp.isfinite(out2)))
    ew = MXU_DTYPE if bf16_ew else jnp.float32
    ref2_same = reference_forward(x2, raw2, mxu_dtype=MXU_DTYPE, ew_dtype=ew)
    ref2_f32 = reference_forward(x2, raw2)
    tol2 = 2e-2 if bf16_ew else 1e-3
    np.testing.assert_allclose(np.asarray(out2), np.asarray(ref2_same),
                               rtol=tol2, atol=tol2)
    np.testing.assert_allclose(np.asarray(out2), np.asarray(ref2_f32),
                               rtol=5e-2, atol=5e-2)

    print("KERNEL_OK")
</pallas_src>

<mosaic_0001>
module attributes {stable_mosaic.version = 11 : i64} {
  func.func @kernel(%arg0: memref<256x128xf32, #tpu.memory_space<vmem>>, %arg1: memref<512x128xbf16, #tpu.memory_space<vmem>>, %arg2: memref<8x128xf32, #tpu.memory_space<vmem>>, %arg3: memref<256x128xf32, #tpu.memory_space<vmem>>) attributes {dimension_semantics = [], scalar_prefetch = 0 : i64, scratch_operands = 0 : i64, tpu.core_type = #tpu.core_type<tc>} {
    %c0 = arith.constant 0 : index
    %c0_0 = arith.constant 0 : index
    %0 = vector.load %arg0[%c0, %c0_0] : memref<256x128xf32, #tpu.memory_space<vmem>>, vector<256x128xf32>
    %1 = tpu.iota {dimensions = array<i32: 0>} : vector<256x128xi32>
    %c250_i32 = arith.constant 250 : i32
    %2 = vector.broadcast %c250_i32 : i32 to vector<256x128xi32>
    %3 = arith.cmpi slt, %1, %2 : vector<256x128xi32>
    %4 = arith.extui %3 : vector<256x128xi1> to vector<256x128xi32>
    %5 = arith.sitofp %4 : vector<256x128xi32> to vector<256x128xf32>
    %c0_1 = arith.constant 0 : index
    %c0_2 = arith.constant 0 : index
    %6 = vector.load %arg1[%c0_1, %c0_2] : memref<512x128xbf16, #tpu.memory_space<vmem>>, vector<128x128xbf16>
    %c0_3 = arith.constant 0 : index
    %c0_4 = arith.constant 0 : index
    %7 = vector.load %arg2[%c0_3, %c0_4] : memref<8x128xf32, #tpu.memory_space<vmem>>, vector<1x128xf32>
    %8 = arith.truncf %0 : vector<256x128xf32> to vector<256x128xbf16>
    %cst = arith.constant dense<0.000000e+00> : vector<256x128xf32>
    %9 = tpu.matmul %8, %6, %cst {dimension_numbers = #tpu.dot_dimension_numbers<[1], [0], [0], [1], [0, 0, 1, 1], [], []>} : vector<256x128xbf16>, vector<128x128xbf16>, vector<256x128xf32> -> vector<256x128xf32>
    %c1 = arith.constant 1 : index
    %c0_5 = arith.constant 0 : index
    %10 = vector.load %arg2[%c1, %c0_5] : memref<8x128xf32, #tpu.memory_space<vmem>>, vector<1x128xf32>
    %c2 = arith.constant 2 : index
    %c0_6 = arith.constant 0 : index
    %11 = vector.load %arg2[%c2, %c0_6] : memref<8x128xf32, #tpu.memory_space<vmem>>, vector<1x128xf32>
    %12 = vector.broadcast %7 : vector<1x128xf32> to vector<256x128xf32>
    %13 = arith.addf %9, %12 : vector<256x128xf32>
    %14 = arith.mulf %13, %5 : vector<256x128xf32>
    %cst_7 = arith.constant dense<0.000000e+00> : vector<128xf32>
    %15 = vector.multi_reduction <add>, %14, %cst_7 [0] : vector<256x128xf32> to vector<128xf32>
    %16 = vector.shape_cast %15 : vector<128xf32> to vector<1x128xf32>
    %cst_8 = arith.constant 4.000000e-03 : f32
    %17 = vector.broadcast %cst_8 : f32 to vector<1x128xf32>
    %18 = arith.mulf %16, %17 : vector<1x128xf32>
    %19 = arith.mulf %14, %14 : vector<256x128xf32>
    %cst_9 = arith.constant dense<0.000000e+00> : vector<128xf32>
    %20 = vector.multi_reduction <add>, %19, %cst_9 [0] : vector<256x128xf32> to vector<128xf32>
    %21 = vector.shape_cast %20 : vector<128xf32> to vector<1x128xf32>
    %cst_10 = arith.constant 4.000000e-03 : f32
    %22 = vector.broadcast %cst_10 : f32 to vector<1x128xf32>
    %23 = arith.mulf %21, %22 : vector<1x128xf32>
    %24 = arith.mulf %18, %18 : vector<1x128xf32>
    %25 = arith.subf %23, %24 : vector<1x128xf32>
    %cst_11 = arith.constant 0.000000e+00 : f32
    %26 = vector.broadcast %cst_11 : f32 to vector<1x128xf32>
    %27 = arith.maximumf %25, %26 : vector<1x128xf32>
    %cst_12 = arith.constant 9.99999974E-6 : f32
    %28 = vector.broadcast %cst_12 : f32 to vector<1x128xf32>
    %29 = arith.addf %27, %28 : vector<1x128xf32>
    %30 = math.rsqrt %29 : vector<1x128xf32>
    %31 = arith.mulf %10, %30 : vector<1x128xf32>
    %32 = arith.mulf %18, %31 : vector<1x128xf32>
    %33 = arith.subf %11, %32 : vector<1x128xf32>
    %34 = vector.broadcast %31 : vector<1x128xf32> to vector<256x128xf32>
    %35 = arith.mulf %13, %34 : vector<256x128xf32>
    %36 = vector.broadcast %33 : vector<1x128xf32> to vector<256x128xf32>
    %37 = arith.addf %35, %36 : vector<256x128xf32>
    %cst_13 = arith.constant 0.000000e+00 : f32
    %38 = vector.broadcast %cst_13 : f32 to vector<256x128xf32>
    %39 = arith.maximumf %37, %38 : vector<256x128xf32>
    %c128 = arith.constant 128 : index
    %c0_14 = arith.constant 0 : index
    %40 = vector.load %arg1[%c128, %c0_14] : memref<512x128xbf16, #tpu.memory_space<vmem>>, vector<128x128xbf16>
    %c3 = arith.constant 3 : index
    %c0_15 = arith.constant 0 : index
    %41 = vector.load %arg2[%c3, %c0_15] : memref<8x128xf32, #tpu.memory_space<vmem>>, vector<1x128xf32>
    %42 = arith.truncf %39 : vector<256x128xf32> to vector<256x128xbf16>
    %cst_16 = arith.constant dense<0.000000e+00> : vector<256x128xf32>
    %43 = tpu.matmul %42, %40, %cst_16 {dimension_numbers = #tpu.dot_dimension_numbers<[1], [0], [0], [1], [0, 0, 1, 1], [], []>} : vector<256x128xbf16>, vector<128x128xbf16>, vector<256x128xf32> -> vector<256x128xf32>
    %44 = vector.broadcast %41 : vector<1x128xf32> to vector<256x128xf32>
    %45 = arith.addf %43, %44 : vector<256x128xf32>
    %46 = arith.negf %45 : vector<256x128xf32>
    %47 = math.exp %46 : vector<256x128xf32>
    %cst_17 = arith.constant 1.000000e+00 : f32
    %48 = vector.broadcast %cst_17 : f32 to vector<256x128xf32>
    %49 = arith.addf %48, %47 : vector<256x128xf32>
    %50 = arith.divf %48, %49 : vector<256x128xf32>
    %c256 = arith.constant 256 : index
    %c0_18 = arith.constant 0 : index
    %51 = vector.load %arg1[%c256, %c0_18] : memref<512x128xbf16, #tpu.memory_space<vmem>>, vector<128x128xbf16>
    %c4 = arith.constant 4 : index
    %c0_19 = arith.constant 0 : index
    %52 = vector.load %arg2[%c4, %c0_19] : memref<8x128xf32, #tpu.memory_space<vmem>>, vector<1x128xf32>
    %53 = arith.truncf %50 : vector<256x128xf32> to vector<256x128xbf16>
    %cst_20 = arith.constant dense<0.000000e+00> : vector<256x128xf32>
    %54 = tpu.matmul %53, %51, %cst_20 {dimension_numbers = #tpu.dot_dimension_numbers<[1], [0], [0], [1], [0, 0, 1, 1], [], []>} : vector<256x128xbf16>, vector<128x128xbf16>, vector<256x128xf32> -> vector<256x128xf32>
    %c5 = arith.constant 5 : index
    %c0_21 = arith.constant 0 : index
    %55 = vector.load %arg2[%c5, %c0_21] : memref<8x128xf32, #tpu.memory_space<vmem>>, vector<1x128xf32>
    %c6 = arith.constant 6 : index
    %c0_22 = arith.constant 0 : index
    %56 = vector.load %arg2[%c6, %c0_22] : memref<8x128xf32, #tpu.memory_space<vmem>>, vector<1x128xf32>
    %57 = vector.broadcast %52 : vector<1x128xf32> to vector<256x128xf32>
    %58 = arith.addf %54, %57 : vector<256x128xf32>
    %59 = arith.mulf %58, %5 : vector<256x128xf32>
    %cst_23 = arith.constant dense<0.000000e+00> : vector<128xf32>
    %60 = vector.multi_reduction <add>, %59, %cst_23 [0] : vector<256x128xf32> to vector<128xf32>
    %61 = vector.shape_cast %60 : vector<128xf32> to vector<1x128xf32>
    %cst_24 = arith.constant 4.000000e-03 : f32
    %62 = vector.broadcast %cst_24 : f32 to vector<1x128xf32>
    %63 = arith.mulf %61, %62 : vector<1x128xf32>
    %64 = arith.mulf %59, %59 : vector<256x128xf32>
    %cst_25 = arith.constant dense<0.000000e+00> : vector<128xf32>
    %65 = vector.multi_reduction <add>, %64, %cst_25 [0] : vector<256x128xf32> to vector<128xf32>
    %66 = vector.shape_cast %65 : vector<128xf32> to vector<1x128xf32>
    %cst_26 = arith.constant 4.000000e-03 : f32
    %67 = vector.broadcast %cst_26 : f32 to vector<1x128xf32>
    %68 = arith.mulf %66, %67 : vector<1x128xf32>
    %69 = arith.mulf %63, %63 : vector<1x128xf32>
    %70 = arith.subf %68, %69 : vector<1x128xf32>
    %cst_27 = arith.constant 0.000000e+00 : f32
    %71 = vector.broadcast %cst_27 : f32 to vector<1x128xf32>
    %72 = arith.maximumf %70, %71 : vector<1x128xf32>
    %cst_28 = arith.constant 9.99999974E-6 : f32
    %73 = vector.broadcast %cst_28 : f32 to vector<1x128xf32>
    %74 = arith.addf %72, %73 : vector<1x128xf32>
    %75 = math.rsqrt %74 : vector<1x128xf32>
    %76 = arith.mulf %55, %75 : vector<1x128xf32>
    %77 = arith.mulf %63, %76 : vector<1x128xf32>
    %78 = arith.subf %56, %77 : vector<1x128xf32>
    %79 = vector.broadcast %76 : vector<1x128xf32> to vector<256x128xf32>
    %80 = arith.mulf %58, %79 : vector<256x128xf32>
    %81 = vector.broadcast %78 : vector<1x128xf32> to vector<256x128xf32>
    %82 = arith.addf %80, %81 : vector<256x128xf32>
    %cst_29 = arith.constant 0.000000e+00 : f32
    %83 = vector.broadcast %cst_29 : f32 to vector<256x128xf32>
    %84 = arith.maximumf %82, %83 : vector<256x128xf32>
    %c384 = arith.constant 384 : index
    %c0_30 = arith.constant 0 : index
    %85 = vector.load %arg1[%c384, %c0_30] : memref<512x128xbf16, #tpu.memory_space<vmem>>, vector<128x128xbf16>
    %c7 = arith.constant 7 : index
    %c0_31 = arith.constant 0 : index
    %86 = vector.load %arg2[%c7, %c0_31] : memref<8x128xf32, #tpu.memory_space<vmem>>, vector<1x128xf32>
    %87 = arith.truncf %84 : vector<256x128xf32> to vector<256x128xbf16>
    %cst_32 = arith.constant dense<0.000000e+00> : vector<256x128xf32>
    %88 = tpu.matmul %87, %85, %cst_32 {dimension_numbers = #tpu.dot_dimension_numbers<[1], [0], [0], [1], [0, 0, 1, 1], [], []>} : vector<256x128xbf16>, vector<128x128xbf16>, vector<256x128xf32> -> vector<256x128xf32>
    %89 = vector.broadcast %86 : vector<1x128xf32> to vector<256x128xf32>
    %90 = arith.addf %88, %89 : vector<256x128xf32>
    %91 = arith.negf %90 : vector<256x128xf32>
    %92 = math.exp %91 : vector<256x128xf32>
    %cst_33 = arith.constant 1.000000e+00 : f32
    %93 = vector.broadcast %cst_33 : f32 to vector<256x128xf32>
    %94 = arith.addf %93, %92 : vector<256x128xf32>
    %95 = arith.divf %93, %94 : vector<256x128xf32>
    %c0_34 = arith.constant 0 : index
    %c0_35 = arith.constant 0 : index
    %96 = vector.load %arg3[%c0_34, %c0_35] : memref<256x128xf32, #tpu.memory_space<vmem>>, vector<256x128xf32>
    tpu.vector_store %arg3[%c0_34, %c0_35], %95 {strides = array<i32>} : memref<256x128xf32, #tpu.memory_space<vmem>>, vector<256x128xf32>,
    return
  }
}

</mosaic_0001>

<llo_original>
// kernel: tpu_custom_call.1
$region0: #{tpu_custom_call.1}
  #allocation0 [shape = 'u32[]', space=smem, size = 0x4, offset = 0x4, fixed_abs, tag = 'smem constant byte address 0x4 - core index']
  #allocation1 [shape = 'u32[144,128]{1,0:T(1,128)}', space=vmem, size = 0x12000, scoped, tag = 'internal scratch']
  %s0 = inlined_call_operand.hbm [shape: f32[256,128], index: 0, kind: input, shape index: {}]
  %s1 = inlined_call_operand.hbm [shape: bf16[512,128], index: 1, kind: input, shape index: {}]
  %s2 = inlined_call_operand.hbm [shape: f32[8,128], index: 2, kind: input, shape index: {}]
  %s3 = inlined_call_operand.hbm [shape: f32[256,128], index: 3, kind: output, shape index: {}]
  %s4 = sld [smem:[#allocation0]]
  $region34: #{tpu_custom_call.1} parent=0
    _
  %s6 = ssub.s32 1, %s4
  %s7 = scalar_select 0, %s6, %s4
  $region1: #{tpu_custom_call.1} parent=0
    #allocation2 [shape = 'u8[131072]{0}', space=vmem, size = 0x20000, scoped, tag = 'input window, operand 0, single buffered']
    #allocation3 [shape = 's32[1]{0}', space=sflag, size = 0x4, scoped, tag = 'scoped memory for tpu_custom_call.1']
    #allocation4 [shape = 's32[1]{0}', space=sflag, size = 0x4, scoped, tag = 'scoped memory for tpu_custom_call.1']
    #allocation5 [shape = 'u8[131072]{0}', space=vmem, size = 0x20000, scoped, tag = 'input window, operand 1, single buffered']
    #allocation6 [shape = 's32[1]{0}', space=sflag, size = 0x4, scoped, tag = 'scoped memory for tpu_custom_call.1']
    #allocation7 [shape = 'u8[4096]{0}', space=vmem, size = 0x1000, scoped, tag = 'input window, operand 2, single buffered']
    #allocation8 [shape = 'u8[131072]{0}', space=vmem, size = 0x20000, scoped, tag = 'output window, operand 0, single buffered']
    %8 = vsyncpa [#allocation3], 0
    %9 = vsyncpa [#allocation6], 0
    %10 = vsyncpa [#allocation4], 0
    // Predicated region
    $region2: #{tpu_custom_call.1} parent=1 // pred_check
      _
    $region3: #{tpu_custom_call.1} parent=1 // pred_check_branch
      %12 = sbr.rel (0) target = $region5
    $region4: #{tpu_custom_call.1} parent=1 // pred_region
      %s14 = ssub.s32 4096, 4096
      %15 = vsyncadd [#allocation3], %s14
      %s16 = sshll.u32 [#allocation2], 4
      %s17 = int_to_ptr.vmem [resolvable:$true] %s16
      %22 = dma.hbm_to_vmem [thread:$0]  %s0, 4096, %s17, [#allocation3], 128, 128, 8
    $region5: #{tpu_custom_call.1} parent=1 // pred_fallthru
      _
    // Predicated region
    $region6: #{tpu_custom_call.1} parent=1 // pred_check
      _
    $region7: #{tpu_custom_call.1} parent=1 // pred_check_branch
      %24 = sbr.rel (0) target = $region9
    $region8: #{tpu_custom_call.1} parent=1 // pred_region
      %s26 = ssub.s32 4096, 4096
      %27 = vsyncadd [#allocation6], %s26
      %s28 = sshll.u32 [#allocation5], 4
      %s29 = int_to_ptr.vmem [resolvable:$true] %s28
      %34 = dma.hbm_to_vmem [thread:$0]  %s1, 4096, %s29, [#allocation6], 64, 64, 4
    $region9: #{tpu_custom_call.1} parent=1 // pred_fallthru
      _
    // Predicated region
    $region10: #{tpu_custom_call.1} parent=1 // pred_check
      _
    $region11: #{tpu_custom_call.1} parent=1 // pred_check_branch
      %36 = sbr.rel (0) target = $region13
    $region12: #{tpu_custom_call.1} parent=1 // pred_region
      %s38 = ssub.s32 128, 128
      %39 = vsyncadd [#allocation6], %s38
      %s41 = sshll.u32 [#allocation7], 4
      %s42 = int_to_ptr.vmem [resolvable:$true] %s41
      %44 = dma.hbm_to_vmem [thread:$0]  %s2, 128, %s42, [#allocation6]
    $region13: #{tpu_custom_call.1} parent=1 // pred_fallthru
      _
    // Predicated region
    $region14: #{tpu_custom_call.1} parent=1 // pred_check
      _
    $region15: #{tpu_custom_call.1} parent=1 // pred_check_branch
      %46 = sbr.rel (0) target = $region17
    $region16: #{tpu_custom_call.1} parent=1 // pred_region
      %47 = dma.done [#allocation3], 4096
    $region17: #{tpu_custom_call.1} parent=1 // pred_fallthru
      _
    // Predicated region
    $region18: #{tpu_custom_call.1} parent=1 // pred_check
      _
    $region19: #{tpu_custom_call.1} parent=1 // pred_check_branch
      %49 = sbr.rel (0) target = $region21
    $region20: #{tpu_custom_call.1} parent=1 // pred_region
      %50 = dma.done [#allocation6], 4096
    $region21: #{tpu_custom_call.1} parent=1 // pred_fallthru
      _
    // Predicated region
    $region22: #{tpu_custom_call.1} parent=1 // pred_check
      _
    $region23: #{tpu_custom_call.1} parent=1 // pred_check_branch
      %52 = sbr.rel (0) target = $region25
    $region24: #{tpu_custom_call.1} parent=1 // pred_region
      %53 = dma.done [#allocation6], 128
    $region25: #{tpu_custom_call.1} parent=1 // pred_fallthru
      _
    %v55 = vld [vmem:[#allocation2] sm:$0xff]
    %v56 = vld [vmem:[#allocation2 + $0x8] sm:$0xff]
    %v57 = vld [vmem:[#allocation2 + $0x10] sm:$0xff]
    %v58 = vld [vmem:[#allocation2 + $0x18] sm:$0xff]
    %v59 = vld [vmem:[#allocation2 + $0x20] sm:$0xff]
    %v60 = vld [vmem:[#allocation2 + $0x28] sm:$0xff]
    %v61 = vld [vmem:[#allocation2 + $0x30] sm:$0xff]
    %v62 = vld [vmem:[#allocation2 + $0x38] sm:$0xff]
    %v63 = vld [vmem:[#allocation2 + $0x40] sm:$0xff]
    %v64 = vld [vmem:[#allocation2 + $0x48] sm:$0xff]
    %v65 = vld [vmem:[#allocation2 + $0x50] sm:$0xff]
    %v66 = vld [vmem:[#allocation2 + $0x58] sm:$0xff]
    %v67 = vld [vmem:[#allocation2 + $0x60] sm:$0xff]
    %v68 = vld [vmem:[#allocation2 + $0x68] sm:$0xff]
    %v69 = vld [vmem:[#allocation2 + $0x70] sm:$0xff]
    %v70 = vld [vmem:[#allocation2 + $0x78] sm:$0xff]
    %v71 = vld [vmem:[#allocation2 + $0x80] sm:$0xff]
    %v72 = vld [vmem:[#allocation2 + $0x88] sm:$0xff]
    %v73 = vld [vmem:[#allocation2 + $0x90] sm:$0xff]
    %v74 = vld [vmem:[#allocation2 + $0x98] sm:$0xff]
    %v75 = vld [vmem:[#allocation2 + $0xa0] sm:$0xff]
    %v76 = vld [vmem:[#allocation2 + $0xa8] sm:$0xff]
    %v77 = vld [vmem:[#allocation2 + $0xb0] sm:$0xff]
    %v78 = vld [vmem:[#allocation2 + $0xb8] sm:$0xff]
    %v79 = vld [vmem:[#allocation2 + $0xc0] sm:$0xff]
    %v80 = vld [vmem:[#allocation2 + $0xc8] sm:$0xff]
    %v81 = vld [vmem:[#allocation2 + $0xd0] sm:$0xff]
    %v82 = vld [vmem:[#allocation2 + $0xd8] sm:$0xff]
    %v83 = vld [vmem:[#allocation2 + $0xe0] sm:$0xff]
    %v84 = vld [vmem:[#allocation2 + $0xe8] sm:$0xff]
    %v85 = vld [vmem:[#allocation2 + $0xf0] sm:$0xff]
    %v86 = vld [vmem:[#allocation2 + $0xf8] sm:$0xff]
    %v87 = vlaneseq
    %v88 = vshrl.u32 %v87, 7
    %v89 = vadd.s32 %v88, 8
    %v90 = vadd.s32 %v88, 16
    %v91 = vadd.s32 %v88, 24
    %v92 = vadd.s32 %v88, 32
    %v93 = vadd.s32 %v88, 40
    %v94 = vadd.s32 %v88, 48
    %v95 = vadd.s32 %v88, 56
    %v96 = vadd.s32 %v88, 64
    %v97 = vadd.s32 %v88, 72
    %v98 = vadd.s32 %v88, 80
    %v99 = vadd.s32 %v88, 88
    %v100 = vadd.s32 %v88, 96
    %v101 = vadd.s32 %v88, 104
    %v102 = vadd.s32 %v88, 112
    %v103 = vadd.s32 %v88, 120
    %v104 = vadd.s32 %v88, 128
    %v105 = vadd.s32 %v88, 136
    %v106 = vadd.s32 %v88, 144
    %v107 = vadd.s32 %v88, 152
    %v108 = vadd.s32 %v88, 160
    %v109 = vadd.s32 %v88, 168
    %v110 = vadd.s32 %v88, 176
    %v111 = vadd.s32 %v88, 184
    %v112 = vadd.s32 %v88, 192
    %v113 = vadd.s32 %v88, 200
    %v114 = vadd.s32 %v88, 208
    %v115 = vadd.s32 %v88, 216
    %v116 = vadd.s32 %v88, 224
    %v117 = vadd.s32 %v88, 232
    %v118 = vadd.s32 %v88, 240
    %v119 = vadd.s32 %v88, 248
    %vm120 = vcmp.lt.s32.totalorder %v88, 250
    %vm121 = vcmp.lt.s32.totalorder %v89, 250
    %vm122 = vcmp.lt.s32.totalorder %v90, 250
    %vm123 = vcmp.lt.s32.totalorder %v91, 250
    %vm124 = vcmp.lt.s32.totalorder %v92, 250
    %vm125 = vcmp.lt.s32.totalorder %v93, 250
    %vm126 = vcmp.lt.s32.totalorder %v94, 250
    %vm127 = vcmp.lt.s32.totalorder %v95, 250
    %vm128 = vcmp.lt.s32.totalorder %v96, 250
    %vm129 = vcmp.lt.s32.totalorder %v97, 250
    %vm130 = vcmp.lt.s32.totalorder %v98, 250
    %vm131 = vcmp.lt.s32.totalorder %v99, 250
    %vm132 = vcmp.lt.s32.totalorder %v100, 250
    %vm133 = vcmp.lt.s32.totalorder %v101, 250
    %vm134 = vcmp.lt.s32.totalorder %v102, 250
    %vm135 = vcmp.lt.s32.totalorder %v103, 250
    %vm136 = vcmp.lt.s32.totalorder %v104, 250
    %vm137 = vcmp.lt.s32.totalorder %v105, 250
    %vm138 = vcmp.lt.s32.totalorder %v106, 250
    %vm139 = vcmp.lt.s32.totalorder %v107, 250
    %vm140 = vcmp.lt.s32.totalorder %v108, 250
    %vm141 = vcmp.lt.s32.totalorder %v109, 250
    %vm142 = vcmp.lt.s32.totalorder %v110, 250
    %vm143 = vcmp.lt.s32.totalorder %v111, 250
    %vm144 = vcmp.lt.s32.totalorder %v112, 250
    %vm145 = vcmp.lt.s32.totalorder %v113, 250
    %vm146 = vcmp.lt.s32.totalorder %v114, 250
    %vm147 = vcmp.lt.s32.totalorder %v115, 250
    %vm148 = vcmp.lt.s32.totalorder %v116, 250
    %vm149 = vcmp.lt.s32.totalorder %v117, 250
    %vm150 = vcmp.lt.s32.totalorder %v118, 250
    %vm151 = vcmp.lt.s32.totalorder %v119, 250
    %v152 = vsel %vm120, 1, 0
    %v153 = vsel %vm121, 1, 0
    %v154 = vsel %vm122, 1, 0
    %v155 = vsel %vm123, 1, 0
    %v156 = vsel %vm124, 1, 0
    %v157 = vsel %vm125, 1, 0
    %v158 = vsel %vm126, 1, 0
    %v159 = vsel %vm127, 1, 0
    %v160 = vsel %vm128, 1, 0
    %v161 = vsel %vm129, 1, 0
    %v162 = vsel %vm130, 1, 0
    %v163 = vsel %vm131, 1, 0
    %v164 = vsel %vm132, 1, 0
    %v165 = vsel %vm133, 1, 0
    %v166 = vsel %vm134, 1, 0
    %v167 = vsel %vm135, 1, 0
    %v168 = vsel %vm136, 1, 0
    %v169 = vsel %vm137, 1, 0
    %v170 = vsel %vm138, 1, 0
    %v171 = vsel %vm139, 1, 0
    %v172 = vsel %vm140, 1, 0
    %v173 = vsel %vm141, 1, 0
    %v174 = vsel %vm142, 1, 0
    %v175 = vsel %vm143, 1, 0
    %v176 = vsel %vm144, 1, 0
    %v177 = vsel %vm145, 1, 0
    %v178 = vsel %vm146, 1, 0
    %v179 = vsel %vm147, 1, 0
    %v180 = vsel %vm148, 1, 0
    %v181 = vsel %vm149, 1, 0
    %v182 = vsel %vm150, 1, 0
    %v183 = vsel %vm151, 1, 0
    %v184 = vcvt.s32.f32 %v152
    %v185 = vcvt.s32.f32 %v153
    %v186 = vcvt.s32.f32 %v154
    %v187 = vcvt.s32.f32 %v155
    %v188 = vcvt.s32.f32 %v156
    %v189 = vcvt.s32.f32 %v157
    %v190 = vcvt.s32.f32 %v158
    %v191 = vcvt.s32.f32 %v159
    %v192 = vcvt.s32.f32 %v160
    %v193 = vcvt.s32.f32 %v161
    %v194 = vcvt.s32.f32 %v162
    %v195 = vcvt.s32.f32 %v163
    %v196 = vcvt.s32.f32 %v164
    %v197 = vcvt.s32.f32 %v165
    %v198 = vcvt.s32.f32 %v166
    %v199 = vcvt.s32.f32 %v167
    %v200 = vcvt.s32.f32 %v168
    %v201 = vcvt.s32.f32 %v169
    %v202 = vcvt.s32.f32 %v170
    %v203 = vcvt.s32.f32 %v171
    %v204 = vcvt.s32.f32 %v172
    %v205 = vcvt.s32.f32 %v173
    %v206 = vcvt.s32.f32 %v174
    %v207 = vcvt.s32.f32 %v175
    %v208 = vcvt.s32.f32 %v176
    %v209 = vcvt.s32.f32 %v177
    %v210 = vcvt.s32.f32 %v178
    %v211 = vcvt.s32.f32 %v179
    %v212 = vcvt.s32.f32 %v180
    %v213 = vcvt.s32.f32 %v181
    %v214 = vcvt.s32.f32 %v182
    %v215 = vcvt.s32.f32 %v183
    %v216 = vld [vmem:[#allocation5] sm:$0xf]
    %v217 = vld [vmem:[#allocation5 + $0x4] sm:$0xf]
    %v218 = vld [vmem:[#allocation5 + $0x8] sm:$0xf]
    %v219 = vld [vmem:[#allocation5 + $0xc] sm:$0xf]
    %v220 = vld [vmem:[#allocation5 + $0x10] sm:$0xf]
    %v221 = vld [vmem:[#allocation5 + $0x14] sm:$0xf]
    %v222 = vld [vmem:[#allocation5 + $0x18] sm:$0xf]
    %v223 = vld [vmem:[#allocation5 + $0x1c] sm:$0xf]
    %v224 = vld [vmem:[#allocation5 + $0x20] sm:$0xf]
    %v225 = vld [vmem:[#allocation5 + $0x24] sm:$0xf]
    %v226 = vld [vmem:[#allocation5 + $0x28] sm:$0xf]
    %v227 = vld [vmem:[#allocation5 + $0x2c] sm:$0xf]
    %v228 = vld [vmem:[#allocation5 + $0x30] sm:$0xf]
    %v229 = vld [vmem:[#allocation5 + $0x34] sm:$0xf]
    %v230 = vld [vmem:[#allocation5 + $0x38] sm:$0xf]
    %v231 = vld [vmem:[#allocation5 + $0x3c] sm:$0xf]
    %v232 = vld [vmem:[#allocation7] sm:$0x1]
    %v233 = vpack.c.bf16 %v56, %v55
    %v234 = vpack.c.bf16 %v58, %v57
    %v235 = vpack.c.bf16 %v60, %v59
    %v236 = vpack.c.bf16 %v62, %v61
    %v237 = vpack.c.bf16 %v64, %v63
    %v238 = vpack.c.bf16 %v66, %v65
    %v239 = vpack.c.bf16 %v68, %v67
    %v240 = vpack.c.bf16 %v70, %v69
    %v241 = vpack.c.bf16 %v72, %v71
    %v242 = vpack.c.bf16 %v74, %v73
    %v243 = vpack.c.bf16 %v76, %v75
    %v244 = vpack.c.bf16 %v78, %v77
    %v245 = vpack.c.bf16 %v80, %v79
    %v246 = vpack.c.bf16 %v82, %v81
    %v247 = vpack.c.bf16 %v84, %v83
    %v248 = vpack.c.bf16 %v86, %v85
    %v249 = vld [vmem:[#allocation7 + $0x1] sm:$0x1]
    %v250 = vld [vmem:[#allocation7 + $0x2] sm:$0x1]
    %v251 = vlaneseq
    %v252 = vshrl.u32 %v251, 7
    %v253 = vsub.s32 0, %v252
    %v254 = vrot.slane %v232, %v253
    %v271 = vunpack.c.l.b16 %v216
    %v272 = vunpack.c.l.b16 %v217
    %v273 = vunpack.c.l.b16 %v218
    %v274 = vunpack.c.l.b16 %v219
    %v275 = vunpack.c.l.b16 %v220
    %v276 = vunpack.c.l.b16 %v221
    %v277 = vunpack.c.l.b16 %v222
    %v278 = vunpack.c.l.b16 %v223
    %v279 = vunpack.c.l.b16 %v224
    %v280 = vunpack.c.l.b16 %v225
    %v281 = vunpack.c.l.b16 %v226
    %v282 = vunpack.c.l.b16 %v227
    %v283 = vunpack.c.l.b16 %v228
    %v284 = vunpack.c.l.b16 %v229
    %v285 = vunpack.c.l.b16 %v230
    %v286 = vunpack.c.l.b16 %v231
    %v287 = vpack.c.b16 %v272, %v271
    %v288 = vpack.c.b16 %v274, %v273
    %v289 = vpack.c.b16 %v276, %v275
    %v290 = vpack.c.b16 %v278, %v277
    %v291 = vpack.c.b16 %v280, %v279
    %v292 = vpack.c.b16 %v282, %v281
    %v293 = vpack.c.b16 %v284, %v283
    %v294 = vpack.c.b16 %v286, %v285
    %303 = vmatprep.subr.bf16.mxu0 0
    %304 = vmatpush1.bf16.msra.mxu0 %v294
    %305 = vmatprep.subr.bf16.mxu0 0
    %306 = vmatpush1.bf16.msra.mxu0 %v293
    %307 = vmatprep.subr.bf16.mxu0 0
    %308 = vmatpush1.bf16.msra.mxu0 %v292
    %309 = vmatprep.subr.bf16.mxu0 0
    %310 = vmatpush1.bf16.msra.mxu0 %v291
    %311 = vmatprep.subr.bf16.mxu0 0
    %312 = vmatpush1.bf16.msra.mxu0 %v290
    %313 = vmatprep.subr.bf16.mxu0 0
    %314 = vmatpush1.bf16.msra.mxu0 %v289
    %315 = vmatprep.subr.bf16.mxu0 0
    %316 = vmatpush1.bf16.msra.mxu0 %v288
    %317 = vmatprep.subr.bf16.mxu0 0
    %318 = vmatpush1.bf16.msra.mxu0 %v287
    %319 = vmatprep.subr.bf16.mxu0 0
    %320 = vmatpush2.bf16.msra.mxu0 0
    %321 = vmatprep.subr.bf16.mxu0 0
    %322 = vmatpush2.bf16.msra.mxu0 0
    %323 = vmatprep.subr.bf16.mxu0 0
    %324 = vmatpush2.bf16.msra.mxu0 0
    %325 = vmatprep.subr.bf16.mxu0 0
    %326 = vmatpush2.bf16.msra.mxu0 0
    %327 = vmatprep.subr.bf16.mxu0 0
    %328 = vmatpush2.bf16.msra.mxu0 0
    %329 = vmatprep.subr.bf16.mxu0 0
    %330 = vmatpush2.bf16.msra.mxu0 0
    %331 = vmatprep.subr.bf16.mxu0 0
    %332 = vmatpush2.bf16.msra.mxu0 0
    %333 = vmatprep.subr.bf16.mxu0 0
    %334 = vmatpush2.bf16.msra.mxu0 0
    %335 = vmatprep.mubr.bf16.mxu0 0
    %336 = vmatmul.mubr.bf16.gmra.mxu0 %v233
    %v337 = vpop.f32.mrf.mxu0
    %v338 = vadd.f32 %v254, %v337
    %v339 = vpop.f32.mrf.mxu0
    %v340 = vpop.f32.mrf.mxu0
    %v341 = vadd.f32 %v254, %v340
    %v342 = vpop.f32.mrf.mxu0
    %343 = vmatprep.mubr.bf16.mxu0 0
    %344 = vmatmul.mubr.bf16.gmra.mxu0 %v234
    %v345 = vpop.f32.mrf.mxu0
    %v346 = vadd.f32 %v254, %v345
    %v347 = vpop.f32.mrf.mxu0
    %v348 = vpop.f32.mrf.mxu0
    %v349 = vadd.f32 %v254, %v348
    %v350 = vpop.f32.mrf.mxu0
    %351 = vmatprep.mubr.bf16.mxu0 0
    %352 = vmatmul.mubr.bf16.gmra.mxu0 %v235
    %v353 = vpop.f32.mrf.mxu0
    %v354 = vadd.f32 %v254, %v353
    %v355 = vpop.f32.mrf.mxu0
    %v356 = vpop.f32.mrf.mxu0
    %v357 = vadd.f32 %v254, %v356
    %v358 = vpop.f32.mrf.mxu0
    %359 = vmatprep.mubr.bf16.mxu0 0
    %360 = vmatmul.mubr.bf16.gmra.mxu0 %v236
    %v361 = vpop.f32.mrf.mxu0
    %v362 = vadd.f32 %v254, %v361
    %v363 = vpop.f32.mrf.mxu0
    %v364 = vpop.f32.mrf.mxu0
    %v365 = vadd.f32 %v254, %v364
    %v366 = vpop.f32.mrf.mxu0
    %367 = vmatprep.mubr.bf16.mxu0 0
    %368 = vmatmul.mubr.bf16.gmra.mxu0 %v237
    %v369 = vpop.f32.mrf.mxu0
    %v370 = vadd.f32 %v254, %v369
    %v371 = vpop.f32.mrf.mxu0
    %v372 = vpop.f32.mrf.mxu0
    %v373 = vadd.f32 %v254, %v372
    %v374 = vpop.f32.mrf.mxu0
    %375 = vmatprep.mubr.bf16.mxu0 0
    %376 = vmatmul.mubr.bf16.gmra.mxu0 %v238
    %v377 = vpop.f32.mrf.mxu0
    %v378 = vadd.f32 %v254, %v377
    %v379 = vpop.f32.mrf.mxu0
    %v380 = vpop.f32.mrf.mxu0
    %v381 = vadd.f32 %v254, %v380
    %v382 = vpop.f32.mrf.mxu0
    %383 = vmatprep.mubr.bf16.mxu0 0
    %384 = vmatmul.mubr.bf16.gmra.mxu0 %v239
    %v385 = vpop.f32.mrf.mxu0
    %v386 = vadd.f32 %v254, %v385
    %v387 = vpop.f32.mrf.mxu0
    %v388 = vpop.f32.mrf.mxu0
    %v389 = vadd.f32 %v254, %v388
    %v390 = vpop.f32.mrf.mxu0
    %391 = vmatprep.mubr.bf16.mxu0 0
    %392 = vmatmul.mubr.bf16.gmra.mxu0 %v240
    %v393 = vpop.f32.mrf.mxu0
    %v394 = vadd.f32 %v254, %v393
    %v395 = vpop.f32.mrf.mxu0
    %v396 = vpop.f32.mrf.mxu0
    %v397 = vadd.f32 %v254, %v396
    %v398 = vpop.f32.mrf.mxu0
    %399 = vmatprep.mubr.bf16.mxu0 0
    %400 = vmatmul.mubr.bf16.gmra.mxu0 %v241
    %v401 = vpop.f32.mrf.mxu0
    %v402 = vadd.f32 %v254, %v401
    %v403 = vpop.f32.mrf.mxu0
    %v404 = vpop.f32.mrf.mxu0
    %v405 = vadd.f32 %v254, %v404
    %v406 = vpop.f32.mrf.mxu0
    %407 = vmatprep.mubr.bf16.mxu0 0
    %408 = vmatmul.mubr.bf16.gmra.mxu0 %v242
    %v409 = vpop.f32.mrf.mxu0
    %v410 = vadd.f32 %v254, %v409
    %v411 = vpop.f32.mrf.mxu0
    %v412 = vpop.f32.mrf.mxu0
    %v413 = vadd.f32 %v254, %v412
    %v414 = vpop.f32.mrf.mxu0
    %415 = vmatprep.mubr.bf16.mxu0 0
    %416 = vmatmul.mubr.bf16.gmra.mxu0 %v243
    %v417 = vpop.f32.mrf.mxu0
    %v418 = vadd.f32 %v254, %v417
    %v419 = vpop.f32.mrf.mxu0
    %v420 = vpop.f32.mrf.mxu0
    %v421 = vadd.f32 %v254, %v420
    %v422 = vpop.f32.mrf.mxu0
    %423 = vmatprep.mubr.bf16.mxu0 0
    %424 = vmatmul.mubr.bf16.gmra.mxu0 %v244
    %v425 = vpop.f32.mrf.mxu0
    %v426 = vadd.f32 %v254, %v425
    %v427 = vpop.f32.mrf.mxu0
    %v428 = vpop.f32.mrf.mxu0
    %v429 = vadd.f32 %v254, %v428
    %v430 = vpop.f32.mrf.mxu0
    %431 = vmatprep.mubr.bf16.mxu0 0
    %432 = vmatmul.mubr.bf16.gmra.mxu0 %v245
    %v433 = vpop.f32.mrf.mxu0
    %v434 = vadd.f32 %v254, %v433
    %v435 = vpop.f32.mrf.mxu0
    %v436 = vpop.f32.mrf.mxu0
    %v437 = vadd.f32 %v254, %v436
    %v438 = vpop.f32.mrf.mxu0
    %439 = vmatprep.mubr.bf16.mxu0 0
    %440 = vmatmul.mubr.bf16.gmra.mxu0 %v246
    %v441 = vpop.f32.mrf.mxu0
    %v442 = vadd.f32 %v254, %v441
    %v443 = vpop.f32.mrf.mxu0
    %v444 = vpop.f32.mrf.mxu0
    %v445 = vadd.f32 %v254, %v444
    %v446 = vpop.f32.mrf.mxu0
    %447 = vmatprep.mubr.bf16.mxu0 0
    %448 = vmatmul.mubr.bf16.gmra.mxu0 %v247
    %v449 = vpop.f32.mrf.mxu0
    %v450 = vadd.f32 %v254, %v449
    %v451 = vpop.f32.mrf.mxu0
    %v452 = vpop.f32.mrf.mxu0
    %v453 = vadd.f32 %v254, %v452
    %v454 = vpop.f32.mrf.mxu0
    %455 = vmatprep.mubr.bf16.mxu0 0
    %456 = vmatmul.mubr.bf16.gmra.mxu0 %v248
    %v457 = vpop.f32.mrf.mxu0
    %v458 = vadd.f32 %v254, %v457
    %v459 = vpop.f32.mrf.mxu0
    %v460 = vpop.f32.mrf.mxu0
    %v461 = vadd.f32 %v254, %v460
    %v462 = vpop.f32.mrf.mxu0
    %463 = vdwg.mxu0
    %v464 = vmul.f32 %v338, %v184
    %v465 = vmul.f32 %v341, %v185
    %v466 = vmul.f32 %v346, %v186
    %v467 = vmul.f32 %v349, %v187
    %v468 = vmul.f32 %v354, %v188
    %v469 = vmul.f32 %v357, %v189
    %v470 = vmul.f32 %v362, %v190
    %v471 = vmul.f32 %v365, %v191
    %v472 = vmul.f32 %v370, %v192
    %v473 = vmul.f32 %v373, %v193
    %v474 = vmul.f32 %v378, %v194
    %v475 = vmul.f32 %v381, %v195
    %v476 = vmul.f32 %v386, %v196
    %v477 = vmul.f32 %v389, %v197
    %v478 = vmul.f32 %v394, %v198
    %v479 = vmul.f32 %v397, %v199
    %v480 = vmul.f32 %v402, %v200
    %v481 = vmul.f32 %v405, %v201
    %v482 = vmul.f32 %v410, %v202
    %v483 = vmul.f32 %v413, %v203
    %v484 = vmul.f32 %v418, %v204
    %v485 = vmul.f32 %v421, %v205
    %v486 = vmul.f32 %v426, %v206
    %v487 = vmul.f32 %v429, %v207
    %v488 = vmul.f32 %v434, %v208
    %v489 = vmul.f32 %v437, %v209
    %v490 = vmul.f32 %v442, %v210
    %v491 = vmul.f32 %v445, %v211
    %v492 = vmul.f32 %v450, %v212
    %v493 = vmul.f32 %v453, %v213
    %v494 = vmul.f32 %v458, %v214
    %v495 = vmul.f32 %v461, %v215
    %v496 = vadd.f32 %v464, %v465
    %v497 = vadd.f32 %v496, %v466
    %v498 = vadd.f32 %v497, %v467
    %v499 = vadd.f32 %v498, %v468
    %v500 = vadd.f32 %v499, %v469
    %v501 = vadd.f32 %v500, %v470
    %v502 = vadd.f32 %v501, %v471
    %v503 = vadd.f32 %v502, %v472
    %v504 = vadd.f32 %v503, %v473
    %v505 = vadd.f32 %v504, %v474
    %v506 = vadd.f32 %v505, %v475
    %v507 = vadd.f32 %v506, %v476
    %v508 = vadd.f32 %v507, %v477
    %v509 = vadd.f32 %v508, %v478
    %v510 = vadd.f32 %v509, %v479
    %v511 = vadd.f32 %v510, %v480
    %v512 = vadd.f32 %v511, %v481
    %v513 = vadd.f32 %v512, %v482
    %v514 = vadd.f32 %v513, %v483
    %v515 = vadd.f32 %v514, %v484
    %v516 = vadd.f32 %v515, %v485
    %v517 = vadd.f32 %v516, %v486
    %v518 = vadd.f32 %v517, %v487
    %v519 = vadd.f32 %v518, %v488
    %v520 = vadd.f32 %v519, %v489
    %v521 = vadd.f32 %v520, %v490
    %v522 = vadd.f32 %v521, %v491
    %v523 = vadd.f32 %v522, %v492
    %v524 = vadd.f32 %v523, %v493
    %v525 = vadd.f32 %v524, %v494
    %v526 = vadd.f32 %v525, %v495
    %v527 = vrot.slane %v526, 4
    %v528 = vadd.f32 %v526, %v527
    %v529 = vrot.slane %v528, 2
    %v530 = vadd.f32 %v528, %v529
    %v531 = vrot.slane %v530, 1
    %v532 = vadd.f32 %v530, %v531
    %v533 = vmul.f32 %v532, 0.004
    %v534 = vmul.f32 %v464, %v464
    %v535 = vmul.f32 %v465, %v465
    %v536 = vmul.f32 %v466, %v466
    %v537 = vmul.f32 %v467, %v467
    %v538 = vmul.f32 %v468, %v468
    %v539 = vmul.f32 %v469, %v469
    %v540 = vmul.f32 %v470, %v470
    %v541 = vmul.f32 %v471, %v471
    %v542 = vmul.f32 %v472, %v472
    %v543 = vmul.f32 %v473, %v473
    %v544 = vmul.f32 %v474, %v474
    %v545 = vmul.f32 %v475, %v475
    %v546 = vmul.f32 %v476, %v476
    %v547 = vmul.f32 %v477, %v477
    %v548 = vmul.f32 %v478, %v478
    %v549 = vmul.f32 %v479, %v479
    %v550 = vmul.f32 %v480, %v480
    %v551 = vmul.f32 %v481, %v481
    %v552 = vmul.f32 %v482, %v482
    %v553 = vmul.f32 %v483, %v483
    %v554 = vmul.f32 %v484, %v484
    %v555 = vmul.f32 %v485, %v485
    %v556 = vmul.f32 %v486, %v486
    %v557 = vmul.f32 %v487, %v487
    %v558 = vmul.f32 %v488, %v488
    %v559 = vmul.f32 %v489, %v489
    %v560 = vmul.f32 %v490, %v490
    %v561 = vmul.f32 %v491, %v491
    %v562 = vmul.f32 %v492, %v492
    %v563 = vmul.f32 %v493, %v493
    %v564 = vmul.f32 %v494, %v494
    %v565 = vmul.f32 %v495, %v495
    %v566 = vadd.f32 %v534, %v535
    %v567 = vadd.f32 %v566, %v536
    %v568 = vadd.f32 %v567, %v537
    %v569 = vadd.f32 %v568, %v538
    %v570 = vadd.f32 %v569, %v539
    %v571 = vadd.f32 %v570, %v540
    %v572 = vadd.f32 %v571, %v541
    %v573 = vadd.f32 %v572, %v542
    %v574 = vadd.f32 %v573, %v543
    %v575 = vadd.f32 %v574, %v544
    %v576 = vadd.f32 %v575, %v545
    %v577 = vadd.f32 %v576, %v546
    %v578 = vadd.f32 %v577, %v547
    %v579 = vadd.f32 %v578, %v548
    %v580 = vadd.f32 %v579, %v549
    %v581 = vadd.f32 %v580, %v550
    %v582 = vadd.f32 %v581, %v551
    %v583 = vadd.f32 %v582, %v552
    %v584 = vadd.f32 %v583, %v553
    %v585 = vadd.f32 %v584, %v554
    %v586 = vadd.f32 %v585, %v555
    %v587 = vadd.f32 %v586, %v556
    %v588 = vadd.f32 %v587, %v557
    %v589 = vadd.f32 %v588, %v558
    %v590 = vadd.f32 %v589, %v559
    %v591 = vadd.f32 %v590, %v560
    %v592 = vadd.f32 %v591, %v561
    %v593 = vadd.f32 %v592, %v562
    %v594 = vadd.f32 %v593, %v563
    %v595 = vadd.f32 %v594, %v564
    %v596 = vadd.f32 %v595, %v565
    %v597 = vrot.slane %v596, 4
    %v598 = vadd.f32 %v596, %v597
    %v599 = vrot.slane %v598, 2
    %v600 = vadd.f32 %v598, %v599
    %v601 = vrot.slane %v600, 1
    %v602 = vadd.f32 %v600, %v601
    %v603 = vmul.f32 %v602, 0.004
    %v604 = vmul.f32 %v533, %v533
    %v605 = vsub.f32 %v603, %v604
    %v606 = vmax.f32 %v605, 0.0
    %v607 = vadd.f32 %v606, 1e-05
    %v608 = vrsqrt.pop %v607
    %v609 = vmul.f32 %v249, %v608
    %v610 = vmul.f32 %v533, %v609
    %v611 = vsub.f32 %v250, %v610
    %v612 = vlaneseq
    %v613 = vshrl.u32 %v612, 7
    %v614 = vsub.s32 0, %v613
    %v615 = vrot.slane %v609, %v614
    %v616 = vmul.f32 %v338, %v615
    %v617 = vmul.f32 %v341, %v615
    %v618 = vmul.f32 %v346, %v615
    %v619 = vmul.f32 %v349, %v615
    %v620 = vmul.f32 %v354, %v615
    %v621 = vmul.f32 %v357, %v615
    %v622 = vmul.f32 %v362, %v615
    %v623 = vmul.f32 %v365, %v615
    %v624 = vmul.f32 %v370, %v615
    %v625 = vmul.f32 %v373, %v615
    %v626 = vmul.f32 %v378, %v615
    %v627 = vmul.f32 %v381, %v615
    %v628 = vmul.f32 %v386, %v615
    %v629 = vmul.f32 %v389, %v615
    %v630 = vmul.f32 %v394, %v615
    %v631 = vmul.f32 %v397, %v615
    %v632 = vmul.f32 %v402, %v615
    %v633 = vmul.f32 %v405, %v615
    %v634 = vmul.f32 %v410, %v615
    %v635 = vmul.f32 %v413, %v615
    %v636 = vmul.f32 %v418, %v615
    %v637 = vmul.f32 %v421, %v615
    %v638 = vmul.f32 %v426, %v615
    %v639 = vmul.f32 %v429, %v615
    %v640 = vmul.f32 %v434, %v615
    %v641 = vmul.f32 %v437, %v615
    %v642 = vmul.f32 %v442, %v615
    %v643 = vmul.f32 %v445, %v615
    %v644 = vmul.f32 %v450, %v615
    %v645 = vmul.f32 %v453, %v615
    %v646 = vmul.f32 %v458, %v615
    %v647 = vmul.f32 %v461, %v615
    %v648 = vlaneseq
    %v649 = vshrl.u32 %v648, 7
    %v650 = vsub.s32 0, %v649
    %v651 = vrot.slane %v611, %v650
    %v652 = vadd.f32 %v616, %v651
    %v653 = vadd.f32 %v617, %v651
    %v654 = vadd.f32 %v618, %v651
    %v655 = vadd.f32 %v619, %v651
    %v656 = vadd.f32 %v620, %v651
    %v657 = vadd.f32 %v621, %v651
    %v658 = vadd.f32 %v622, %v651
    %v659 = vadd.f32 %v623, %v651
    %v660 = vadd.f32 %v624, %v651
    %v661 = vadd.f32 %v625, %v651
    %v662 = vadd.f32 %v626, %v651
    %v663 = vadd.f32 %v627, %v651
    %v664 = vadd.f32 %v628, %v651
    %v665 = vadd.f32 %v629, %v651
    %v666 = vadd.f32 %v630, %v651
    %v667 = vadd.f32 %v631, %v651
    %v668 = vadd.f32 %v632, %v651
    %v669 = vadd.f32 %v633, %v651
    %v670 = vadd.f32 %v634, %v651
    %v671 = vadd.f32 %v635, %v651
    %v672 = vadd.f32 %v636, %v651
    %v673 = vadd.f32 %v637, %v651
    %v674 = vadd.f32 %v638, %v651
    %v675 = vadd.f32 %v639, %v651
    %v676 = vadd.f32 %v640, %v651
    %v677 = vadd.f32 %v641, %v651
    %v678 = vadd.f32 %v642, %v651
    %v679 = vadd.f32 %v643, %v651
    %v680 = vadd.f32 %v644, %v651
    %v681 = vadd.f32 %v645, %v651
    %v682 = vadd.f32 %v646, %v651
    %v683 = vadd.f32 %v647, %v651
    %v684 = vmax.f32 %v652, 0.0
    %v685 = vmax.f32 %v653, 0.0
    %v686 = vmax.f32 %v654, 0.0
    %v687 = vmax.f32 %v655, 0.0
    %v688 = vmax.f32 %v656, 0.0
    %v689 = vmax.f32 %v657, 0.0
    %v690 = vmax.f32 %v658, 0.0
    %v691 = vmax.f32 %v659, 0.0
    %v692 = vmax.f32 %v660, 0.0
    %v693 = vmax.f32 %v661, 0.0
    %v694 = vmax.f32 %v662, 0.0
    %v695 = vmax.f32 %v663, 0.0
    %v696 = vmax.f32 %v664, 0.0
    %v697 = vmax.f32 %v665, 0.0
    %v698 = vmax.f32 %v666, 0.0
    %v699 = vmax.f32 %v667, 0.0
    %v700 = vmax.f32 %v668, 0.0
    %v701 = vmax.f32 %v669, 0.0
    %v702 = vmax.f32 %v670, 0.0
    %v703 = vmax.f32 %v671, 0.0
    %v704 = vmax.f32 %v672, 0.0
    %v705 = vmax.f32 %v673, 0.0
    %v706 = vmax.f32 %v674, 0.0
    %v707 = vmax.f32 %v675, 0.0
    %v708 = vmax.f32 %v676, 0.0
    %v709 = vmax.f32 %v677, 0.0
    %v710 = vmax.f32 %v678, 0.0
    %v711 = vmax.f32 %v679, 0.0
    %v712 = vmax.f32 %v680, 0.0
    %v713 = vmax.f32 %v681, 0.0
    %v714 = vmax.f32 %v682, 0.0
    %v715 = vmax.f32 %v683, 0.0
    %v716 = vld [vmem:[#allocation5 + $0x40] sm:$0xf]
    %v717 = vld [vmem:[#allocation5 + $0x44] sm:$0xf]
    %v718 = vld [vmem:[#allocation5 + $0x48] sm:$0xf]
    %v719 = vld [vmem:[#allocation5 + $0x4c] sm:$0xf]
    %v720 = vld [vmem:[#allocation5 + $0x50] sm:$0xf]
    %v721 = vld [vmem:[#allocation5 + $0x54] sm:$0xf]
    %v722 = vld [vmem:[#allocation5 + $0x58] sm:$0xf]
    %v723 = vld [vmem:[#allocation5 + $0x5c] sm:$0xf]
    %v724 = vld [vmem:[#allocation5 + $0x60] sm:$0xf]
    %v725 = vld [vmem:[#allocation5 + $0x64] sm:$0xf]
    %v726 = vld [vmem:[#allocation5 + $0x68] sm:$0xf]
    %v727 = vld [vmem:[#allocation5 + $0x6c] sm:$0xf]
    %v728 = vld [vmem:[#allocation5 + $0x70] sm:$0xf]
    %v729 = vld [vmem:[#allocation5 + $0x74] sm:$0xf]
    %v730 = vld [vmem:[#allocation5 + $0x78] sm:$0xf]
    %v731 = vld [vmem:[#allocation5 + $0x7c] sm:$0xf]
    %v732 = vld [vmem:[#allocation7 + $0x3] sm:$0x1]
    %v733 = vpack.c.bf16 %v685, %v684
    %v734 = vpack.c.bf16 %v687, %v686
    %v735 = vpack.c.bf16 %v689, %v688
    %v736 = vpack.c.bf16 %v691, %v690
    %v737 = vpack.c.bf16 %v693, %v692
    %v738 = vpack.c.bf16 %v695, %v694
    %v739 = vpack.c.bf16 %v697, %v696
    %v740 = vpack.c.bf16 %v699, %v698
    %v741 = vpack.c.bf16 %v701, %v700
    %v742 = vpack.c.bf16 %v703, %v702
    %v743 = vpack.c.bf16 %v705, %v704
    %v744 = vpack.c.bf16 %v707, %v706
    %v745 = vpack.c.bf16 %v709, %v708
    %v746 = vpack.c.bf16 %v711, %v710
    %v747 = vpack.c.bf16 %v713, %v712
    %v748 = vpack.c.bf16 %v715, %v714
    %v749 = vlaneseq
    %v750 = vshrl.u32 %v749, 7
    %v751 = vsub.s32 0, %v750
    %v752 = vrot.slane %v732, %v751
    %v769 = vunpack.c.l.b16 %v716
    %v770 = vunpack.c.l.b16 %v717
    %v771 = vunpack.c.l.b16 %v718
    %v772 = vunpack.c.l.b16 %v719
    %v773 = vunpack.c.l.b16 %v720
    %v774 = vunpack.c.l.b16 %v721
    %v775 = vunpack.c.l.b16 %v722
    %v776 = vunpack.c.l.b16 %v723
    %v777 = vunpack.c.l.b16 %v724
    %v778 = vunpack.c.l.b16 %v725
    %v779 = vunpack.c.l.b16 %v726
    %v780 = vunpack.c.l.b16 %v727
    %v781 = vunpack.c.l.b16 %v728
    %v782 = vunpack.c.l.b16 %v729
    %v783 = vunpack.c.l.b16 %v730
    %v784 = vunpack.c.l.b16 %v731
    %v785 = vpack.c.b16 %v770, %v769
    %v786 = vpack.c.b16 %v772, %v771
    %v787 = vpack.c.b16 %v774, %v773
    %v788 = vpack.c.b16 %v776, %v775
    %v789 = vpack.c.b16 %v778, %v777
    %v790 = vpack.c.b16 %v780, %v779
    %v791 = vpack.c.b16 %v782, %v781
    %v792 = vpack.c.b16 %v784, %v783
    %801 = vmatprep.subr.bf16.mxu0 0
    %802 = vmatpush1.bf16.msra.mxu0 %v792
    %803 = vmatprep.subr.bf16.mxu0 0
    %804 = vmatpush1.bf16.msra.mxu0 %v791
    %805 = vmatprep.subr.bf16.mxu0 0
    %806 = vmatpush1.bf16.msra.mxu0 %v790
    %807 = vmatprep.subr.bf16.mxu0 0
    %808 = vmatpush1.bf16.msra.mxu0 %v789
    %809 = vmatprep.subr.bf16.mxu0 0
    %810 = vmatpush1.bf16.msra.mxu0 %v788
    %811 = vmatprep.subr.bf16.mxu0 0
    %812 = vmatpush1.bf16.msra.mxu0 %v787
    %813 = vmatprep.subr.bf16.mxu0 0
    %814 = vmatpush1.bf16.msra.mxu0 %v786
    %815 = vmatprep.subr.bf16.mxu0 0
    %816 = vmatpush1.bf16.msra.mxu0 %v785
    %817 = vmatprep.subr.bf16.mxu0 0
    %818 = vmatpush2.bf16.msra.mxu0 0
    %819 = vmatprep.subr.bf16.mxu0 0
    %820 = vmatpush2.bf16.msra.mxu0 0
    %821 = vmatprep.subr.bf16.mxu0 0
    %822 = vmatpush2.bf16.msra.mxu0 0
    %823 = vmatprep.subr.bf16.mxu0 0
    %824 = vmatpush2.bf16.msra.mxu0 0
    %825 = vmatprep.subr.bf16.mxu0 0
    %826 = vmatpush2.bf16.msra.mxu0 0
    %827 = vmatprep.subr.bf16.mxu0 0
    %828 = vmatpush2.bf16.msra.mxu0 0
    %829 = vmatprep.subr.bf16.mxu0 0
    %830 = vmatpush2.bf16.msra.mxu0 0
    %831 = vmatprep.subr.bf16.mxu0 0
    %832 = vmatpush2.bf16.msra.mxu0 0
    %833 = vmatprep.mubr.bf16.mxu0 0
    %834 = vmatmul.mubr.bf16.gmra.mxu0 %v733
    %v835 = vpop.f32.mrf.mxu0
    %v836 = vadd.f32 %v752, %v835
    %v837 = vpop.f32.mrf.mxu0
    %v838 = vpop.f32.mrf.mxu0
    %v839 = vadd.f32 %v752, %v838
    %v840 = vpop.f32.mrf.mxu0
    %841 = vmatprep.mubr.bf16.mxu0 0
    %842 = vmatmul.mubr.bf16.gmra.mxu0 %v734
    %v843 = vpop.f32.mrf.mxu0
    %v844 = vadd.f32 %v752, %v843
    %v845 = vpop.f32.mrf.mxu0
    %v846 = vpop.f32.mrf.mxu0
    %v847 = vadd.f32 %v752, %v846
    %v848 = vpop.f32.mrf.mxu0
    %849 = vmatprep.mubr.bf16.mxu0 0
    %850 = vmatmul.mubr.bf16.gmra.mxu0 %v735
    %v851 = vpop.f32.mrf.mxu0
    %v852 = vadd.f32 %v752, %v851
    %v853 = vpop.f32.mrf.mxu0
    %v854 = vpop.f32.mrf.mxu0
    %v855 = vadd.f32 %v752, %v854
    %v856 = vpop.f32.mrf.mxu0
    %857 = vmatprep.mubr.bf16.mxu0 0
    %858 = vmatmul.mubr.bf16.gmra.mxu0 %v736
    %v859 = vpop.f32.mrf.mxu0
    %v860 = vadd.f32 %v752, %v859
    %v861 = vpop.f32.mrf.mxu0
    %v862 = vpop.f32.mrf.mxu0
    %v863 = vadd.f32 %v752, %v862
    %v864 = vpop.f32.mrf.mxu0
    %865 = vmatprep.mubr.bf16.mxu0 0
    %866 = vmatmul.mubr.bf16.gmra.mxu0 %v737
    %v867 = vpop.f32.mrf.mxu0
    %v868 = vadd.f32 %v752, %v867
    %v869 = vpop.f32.mrf.mxu0
    %v870 = vpop.f32.mrf.mxu0
    %v871 = vadd.f32 %v752, %v870
    %v872 = vpop.f32.mrf.mxu0
    %873 = vmatprep.mubr.bf16.mxu0 0
    %874 = vmatmul.mubr.bf16.gmra.mxu0 %v738
    %v875 = vpop.f32.mrf.mxu0
    %v876 = vadd.f32 %v752, %v875
    %v877 = vpop.f32.mrf.mxu0
    %v878 = vpop.f32.mrf.mxu0
    %v879 = vadd.f32 %v752, %v878
    %v880 = vpop.f32.mrf.mxu0
    %881 = vmatprep.mubr.bf16.mxu0 0
    %882 = vmatmul.mubr.bf16.gmra.mxu0 %v739
    %v883 = vpop.f32.mrf.mxu0
    %v884 = vadd.f32 %v752, %v883
    %v885 = vpop.f32.mrf.mxu0
    %v886 = vpop.f32.mrf.mxu0
    %v887 = vadd.f32 %v752, %v886
    %v888 = vpop.f32.mrf.mxu0
    %889 = vmatprep.mubr.bf16.mxu0 0
    %890 = vmatmul.mubr.bf16.gmra.mxu0 %v740
    %v891 = vpop.f32.mrf.mxu0
    %v892 = vadd.f32 %v752, %v891
    %v893 = vpop.f32.mrf.mxu0
    %v894 = vpop.f32.mrf.mxu0
    %v895 = vadd.f32 %v752, %v894
    %v896 = vpop.f32.mrf.mxu0
    %897 = vmatprep.mubr.bf16.mxu0 0
    %898 = vmatmul.mubr.bf16.gmra.mxu0 %v741
    %v899 = vpop.f32.mrf.mxu0
    %v900 = vadd.f32 %v752, %v899
    %v901 = vpop.f32.mrf.mxu0
    %v902 = vpop.f32.mrf.mxu0
    %v903 = vadd.f32 %v752, %v902
    %v904 = vpop.f32.mrf.mxu0
    %905 = vmatprep.mubr.bf16.mxu0 0
    %906 = vmatmul.mubr.bf16.gmra.mxu0 %v742
    %v907 = vpop.f32.mrf.mxu0
    %v908 = vadd.f32 %v752, %v907
    %v909 = vpop.f32.mrf.mxu0
    %v910 = vpop.f32.mrf.mxu0
    %v911 = vadd.f32 %v752, %v910
    %v912 = vpop.f32.mrf.mxu0
    %913 = vmatprep.mubr.bf16.mxu0 0
    %914 = vmatmul.mubr.bf16.gmra.mxu0 %v743
    %v915 = vpop.f32.mrf.mxu0
    %v916 = vadd.f32 %v752, %v915
    %v917 = vpop.f32.mrf.mxu0
    %v918 = vpop.f32.mrf.mxu0
    %v919 = vadd.f32 %v752, %v918
    %v920 = vpop.f32.mrf.mxu0
    %921 = vmatprep.mubr.bf16.mxu0 0
    %922 = vmatmul.mubr.bf16.gmra.mxu0 %v744
    %v923 = vpop.f32.mrf.mxu0
    %v924 = vadd.f32 %v752, %v923
    %v925 = vpop.f32.mrf.mxu0
    %v926 = vpop.f32.mrf.mxu0
    %v927 = vadd.f32 %v752, %v926
    %v928 = vpop.f32.mrf.mxu0
    %929 = vmatprep.mubr.bf16.mxu0 0
    %930 = vmatmul.mubr.bf16.gmra.mxu0 %v745
    %v931 = vpop.f32.mrf.mxu0
    %v932 = vadd.f32 %v752, %v931
    %v933 = vpop.f32.mrf.mxu0
    %v934 = vpop.f32.mrf.mxu0
    %v935 = vadd.f32 %v752, %v934
    %v936 = vpop.f32.mrf.mxu0
    %937 = vmatprep.mubr.bf16.mxu0 0
    %938 = vmatmul.mubr.bf16.gmra.mxu0 %v746
    %v939 = vpop.f32.mrf.mxu0
    %v940 = vadd.f32 %v752, %v939
    %v941 = vpop.f32.mrf.mxu0
    %v942 = vpop.f32.mrf.mxu0
    %v943 = vadd.f32 %v752, %v942
    %v944 = vpop.f32.mrf.mxu0
    %945 = vmatprep.mubr.bf16.mxu0 0
    %946 = vmatmul.mubr.bf16.gmra.mxu0 %v747
    %v947 = vpop.f32.mrf.mxu0
    %v948 = vadd.f32 %v752, %v947
    %v949 = vpop.f32.mrf.mxu0
    %v950 = vpop.f32.mrf.mxu0
    %v951 = vadd.f32 %v752, %v950
    %v952 = vpop.f32.mrf.mxu0
    %953 = vmatprep.mubr.bf16.mxu0 0
    %954 = vmatmul.mubr.bf16.gmra.mxu0 %v748
    %v955 = vpop.f32.mrf.mxu0
    %v956 = vadd.f32 %v752, %v955
    %v957 = vpop.f32.mrf.mxu0
    %v958 = vpop.f32.mrf.mxu0
    %v959 = vadd.f32 %v752, %v958
    %v960 = vpop.f32.mrf.mxu0
    %961 = vdwg.mxu0
    %v962 = vxor.u32 %v836, 2147483648
    %v963 = vxor.u32 %v839, 2147483648
    %v964 = vxor.u32 %v844, 2147483648
    %v965 = vxor.u32 %v847, 2147483648
    %v966 = vxor.u32 %v852, 2147483648
    %v967 = vxor.u32 %v855, 2147483648
    %v968 = vxor.u32 %v860, 2147483648
    %v969 = vxor.u32 %v863, 2147483648
    %v970 = vxor.u32 %v868, 2147483648
    %v971 = vxor.u32 %v871, 2147483648
    %v972 = vxor.u32 %v876, 2147483648
    %v973 = vxor.u32 %v879, 2147483648
    %v974 = vxor.u32 %v884, 2147483648
    %v975 = vxor.u32 %v887, 2147483648
    %v976 = vxor.u32 %v892, 2147483648
    %v977 = vxor.u32 %v895, 2147483648
    %v978 = vxor.u32 %v900, 2147483648
    %v979 = vxor.u32 %v903, 2147483648
    %v980 = vxor.u32 %v908, 2147483648
    %v981 = vxor.u32 %v911, 2147483648
    %v982 = vxor.u32 %v916, 2147483648
    %v983 = vxor.u32 %v919, 2147483648
    %v984 = vxor.u32 %v924, 2147483648
    %v985 = vxor.u32 %v927, 2147483648
    %v986 = vxor.u32 %v932, 2147483648
    %v987 = vxor.u32 %v935, 2147483648
    %v988 = vxor.u32 %v940, 2147483648
    %v989 = vxor.u32 %v943, 2147483648
    %v990 = vxor.u32 %v948, 2147483648
    %v991 = vxor.u32 %v951, 2147483648
    %v992 = vxor.u32 %v956, 2147483648
    %v993 = vxor.u32 %v959, 2147483648
    %v994 = vmul.f32 %v962, 1.442695
    %v995 = vpow.pop %v994
    %v996 = vmul.f32 %v963, 1.442695
    %v997 = vpow.pop %v996
    %v998 = vmul.f32 %v964, 1.442695
    %v999 = vpow.pop %v998
    %v1000 = vmul.f32 %v965, 1.442695
    %v1001 = vpow.pop %v1000
    %v1002 = vmul.f32 %v966, 1.442695
    %v1003 = vpow.pop %v1002
    %v1004 = vmul.f32 %v967, 1.442695
    %v1005 = vpow.pop %v1004
    %v1006 = vmul.f32 %v968, 1.442695
    %v1007 = vpow.pop %v1006
    %v1008 = vmul.f32 %v969, 1.442695
    %v1009 = vpow.pop %v1008
    %v1010 = vmul.f32 %v970, 1.442695
    %v1011 = vpow.pop %v1010
    %v1012 = vmul.f32 %v971, 1.442695
    %v1013 = vpow.pop %v1012
    %v1014 = vmul.f32 %v972, 1.442695
    %v1015 = vpow.pop %v1014
    %v1016 = vmul.f32 %v973, 1.442695
    %v1017 = vpow.pop %v1016
    %v1018 = vmul.f32 %v974, 1.442695
    %v1019 = vpow.pop %v1018
    %v1020 = vmul.f32 %v975, 1.442695
    %v1021 = vpow.pop %v1020
    %v1022 = vmul.f32 %v976, 1.442695
    %v1023 = vpow.pop %v1022
    %v1024 = vmul.f32 %v977, 1.442695
    %v1025 = vpow.pop %v1024
    %v1026 = vmul.f32 %v978, 1.442695
    %v1027 = vpow.pop %v1026
    %v1028 = vmul.f32 %v979, 1.442695
    %v1029 = vpow.pop %v1028
    %v1030 = vmul.f32 %v980, 1.442695
    %v1031 = vpow.pop %v1030
    %v1032 = vmul.f32 %v981, 1.442695
    %v1033 = vpow.pop %v1032
    %v1034 = vmul.f32 %v982, 1.442695
    %v1035 = vpow.pop %v1034
    %v1036 = vmul.f32 %v983, 1.442695
    %v1037 = vpow.pop %v1036
    %v1038 = vmul.f32 %v984, 1.442695
    %v1039 = vpow.pop %v1038
    %v1040 = vmul.f32 %v985, 1.442695
    %v1041 = vpow.pop %v1040
    %v1042 = vmul.f32 %v986, 1.442695
    %v1043 = vpow.pop %v1042
    %v1044 = vmul.f32 %v987, 1.442695
    %v1045 = vpow.pop %v1044
    %v1046 = vmul.f32 %v988, 1.442695
    %v1047 = vpow.pop %v1046
    %v1048 = vmul.f32 %v989, 1.442695
    %v1049 = vpow.pop %v1048
    %v1050 = vmul.f32 %v990, 1.442695
    %v1051 = vpow.pop %v1050
    %v1052 = vmul.f32 %v991, 1.442695
    %v1053 = vpow.pop %v1052
    %v1054 = vmul.f32 %v992, 1.442695
    %v1055 = vpow.pop %v1054
    %v1056 = vmul.f32 %v993, 1.442695
    %v1057 = vpow.pop %v1056
    %v1058 = vadd.f32 %v995, 1.0
    %v1059 = vadd.f32 %v997, 1.0
    %v1060 = vadd.f32 %v999, 1.0
    %v1061 = vadd.f32 %v1001, 1.0
    %v1062 = vadd.f32 %v1003, 1.0
    %v1063 = vadd.f32 %v1005, 1.0
    %v1064 = vadd.f32 %v1007, 1.0
    %v1065 = vadd.f32 %v1009, 1.0
    %v1066 = vadd.f32 %v1011, 1.0
    %v1067 = vadd.f32 %v1013, 1.0
    %v1068 = vadd.f32 %v1015, 1.0
    %v1069 = vadd.f32 %v1017, 1.0
    %v1070 = vadd.f32 %v1019, 1.0
    %v1071 = vadd.f32 %v1021, 1.0
    %v1072 = vadd.f32 %v1023, 1.0
    %v1073 = vadd.f32 %v1025, 1.0
    %v1074 = vadd.f32 %v1027, 1.0
    %v1075 = vadd.f32 %v1029, 1.0
    %v1076 = vadd.f32 %v1031, 1.0
    %v1077 = vadd.f32 %v1033, 1.0
    %v1078 = vadd.f32 %v1035, 1.0
    %v1079 = vadd.f32 %v1037, 1.0
    %v1080 = vadd.f32 %v1039, 1.0
    %v1081 = vadd.f32 %v1041, 1.0
    %v1082 = vadd.f32 %v1043, 1.0
    %v1083 = vadd.f32 %v1045, 1.0
    %v1084 = vadd.f32 %v1047, 1.0
    %v1085 = vadd.f32 %v1049, 1.0
    %v1086 = vadd.f32 %v1051, 1.0
    %v1087 = vadd.f32 %v1053, 1.0
    %v1088 = vadd.f32 %v1055, 1.0
    %v1089 = vadd.f32 %v1057, 1.0
    %v1090 = vrcp.pop %v1058
    %v1091 = vmul.f32 1.0, %v1090
    %v1092 = vrcp.pop %v1059
    %v1093 = vmul.f32 1.0, %v1092
    %v1094 = vrcp.pop %v1060
    %v1095 = vmul.f32 1.0, %v1094
    %v1096 = vrcp.pop %v1061
    %v1097 = vmul.f32 1.0, %v1096
    %v1098 = vrcp.pop %v1062
    %v1099 = vmul.f32 1.0, %v1098
    %v1100 = vrcp.pop %v1063
    %v1101 = vmul.f32 1.0, %v1100
    %v1102 = vrcp.pop %v1064
    %v1103 = vmul.f32 1.0, %v1102
    %v1104 = vrcp.pop %v1065
    %v1105 = vmul.f32 1.0, %v1104
    %v1106 = vrcp.pop %v1066
    %v1107 = vmul.f32 1.0, %v1106
    %v1108 = vrcp.pop %v1067
    %v1109 = vmul.f32 1.0, %v1108
    %v1110 = vrcp.pop %v1068
    %v1111 = vmul.f32 1.0, %v1110
    %v1112 = vrcp.pop %v1069
    %v1113 = vmul.f32 1.0, %v1112
    %v1114 = vrcp.pop %v1070
    %v1115 = vmul.f32 1.0, %v1114
    %v1116 = vrcp.pop %v1071
    %v1117 = vmul.f32 1.0, %v1116
    %v1118 = vrcp.pop %v1072
    %v1119 = vmul.f32 1.0, %v1118
    %v1120 = vrcp.pop %v1073
    %v1121 = vmul.f32 1.0, %v1120
    %v1122 = vrcp.pop %v1074
    %v1123 = vmul.f32 1.0, %v1122
    %v1124 = vrcp.pop %v1075
    %v1125 = vmul.f32 1.0, %v1124
    %v1126 = vrcp.pop %v1076
    %v1127 = vmul.f32 1.0, %v1126
    %v1128 = vrcp.pop %v1077
    %v1129 = vmul.f32 1.0, %v1128
    %v1130 = vrcp.pop %v1078
    %v1131 = vmul.f32 1.0, %v1130
    %v1132 = vrcp.pop %v1079
    %v1133 = vmul.f32 1.0, %v1132
    %v1134 = vrcp.pop %v1080
    %v1135 = vmul.f32 1.0, %v1134
    %v1136 = vrcp.pop %v1081
    %v1137 = vmul.f32 1.0, %v1136
    %v1138 = vrcp.pop %v1082
    %v1139 = vmul.f32 1.0, %v1138
    %v1140 = vrcp.pop %v1083
    %v1141 = vmul.f32 1.0, %v1140
    %v1142 = vrcp.pop %v1084
    %v1143 = vmul.f32 1.0, %v1142
    %v1144 = vrcp.pop %v1085
    %v1145 = vmul.f32 1.0, %v1144
    %v1146 = vrcp.pop %v1086
    %v1147 = vmul.f32 1.0, %v1146
    %v1148 = vrcp.pop %v1087
    %v1149 = vmul.f32 1.0, %v1148
    %v1150 = vrcp.pop %v1088
    %v1151 = vmul.f32 1.0, %v1150
    %v1152 = vrcp.pop %v1089
    %v1153 = vmul.f32 1.0, %v1152
    %v1154 = vld [vmem:[#allocation5 + $0x80] sm:$0xf]
    %v1155 = vld [vmem:[#allocation5 + $0x84] sm:$0xf]
    %v1156 = vld [vmem:[#allocation5 + $0x88] sm:$0xf]
    %v1157 = vld [vmem:[#allocation5 + $0x8c] sm:$0xf]
    %v1158 = vld [vmem:[#allocation5 + $0x90] sm:$0xf]
    %v1159 = vld [vmem:[#allocation5 + $0x94] sm:$0xf]
    %v1160 = vld [vmem:[#allocation5 + $0x98] sm:$0xf]
    %v1161 = vld [vmem:[#allocation5 + $0x9c] sm:$0xf]
    %v1162 = vld [vmem:[#allocation5 + $0xa0] sm:$0xf]
    %v1163 = vld [vmem:[#allocation5 + $0xa4] sm:$0xf]
    %v1164 = vld [vmem:[#allocation5 + $0xa8] sm:$0xf]
    %v1165 = vld [vmem:[#allocation5 + $0xac] sm:$0xf]
    %v1166 = vld [vmem:[#allocation5 + $0xb0] sm:$0xf]
    %v1167 = vld [vmem:[#allocation5 + $0xb4] sm:$0xf]
    %v1168 = vld [vmem:[#allocation5 + $0xb8] sm:$0xf]
    %v1169 = vld [vmem:[#allocation5 + $0xbc] sm:$0xf]
    %v1170 = vld [vmem:[#allocation7 + $0x4] sm:$0x1]
    %v1171 = vpack.c.bf16 %v1093, %v1091
    %v1172 = vpack.c.bf16 %v1097, %v1095
    %v1173 = vpack.c.bf16 %v1101, %v1099
    %v1174 = vpack.c.bf16 %v1105, %v1103
    %v1175 = vpack.c.bf16 %v1109, %v1107
    %v1176 = vpack.c.bf16 %v1113, %v1111
    %v1177 = vpack.c.bf16 %v1117, %v1115
    %v1178 = vpack.c.bf16 %v1121, %v1119
    %v1179 = vpack.c.bf16 %v1125, %v1123
    %v1180 = vpack.c.bf16 %v1129, %v1127
    %v1181 = vpack.c.bf16 %v1133, %v1131
    %v1182 = vpack.c.bf16 %v1137, %v1135
    %v1183 = vpack.c.bf16 %v1141, %v1139
    %v1184 = vpack.c.bf16 %v1145, %v1143
    %v1185 = vpack.c.bf16 %v1149, %v1147
    %v1186 = vpack.c.bf16 %v1153, %v1151
    %v1187 = vld [vmem:[#allocation7 + $0x5] sm:$0x1]
    %v1188 = vld [vmem:[#allocation7 + $0x6] sm:$0x1]
    %v1189 = vlaneseq
    %v1190 = vshrl.u32 %v1189, 7
    %v1191 = vsub.s32 0, %v1190
    %v1192 = vrot.slane %v1170, %v1191
    %v1209 = vunpack.c.l.b16 %v1154
    %v1210 = vunpack.c.l.b16 %v1155
    %v1211 = vunpack.c.l.b16 %v1156
    %v1212 = vunpack.c.l.b16 %v1157
    %v1213 = vunpack.c.l.b16 %v1158
    %v1214 = vunpack.c.l.b16 %v1159
    %v1215 = vunpack.c.l.b16 %v1160
    %v1216 = vunpack.c.l.b16 %v1161
    %v1217 = vunpack.c.l.b16 %v1162
    %v1218 = vunpack.c.l.b16 %v1163
    %v1219 = vunpack.c.l.b16 %v1164
    %v1220 = vunpack.c.l.b16 %v1165
    %v1221 = vunpack.c.l.b16 %v1166
    %v1222 = vunpack.c.l.b16 %v1167
    %v1223 = vunpack.c.l.b16 %v1168
    %v1224 = vunpack.c.l.b16 %v1169
    %v1225 = vpack.c.b16 %v1210, %v1209
    %v1226 = vpack.c.b16 %v1212, %v1211
    %v1227 = vpack.c.b16 %v1214, %v1213
    %v1228 = vpack.c.b16 %v1216, %v1215
    %v1229 = vpack.c.b16 %v1218, %v1217
    %v1230 = vpack.c.b16 %v1220, %v1219
    %v1231 = vpack.c.b16 %v1222, %v1221
    %v1232 = vpack.c.b16 %v1224, %v1223
    %1241 = vmatprep.subr.bf16.mxu0 0
    %1242 = vmatpush1.bf16.msra.mxu0 %v1232
    %1243 = vmatprep.subr.bf16.mxu0 0
    %1244 = vmatpush1.bf16.msra.mxu0 %v1231
    %1245 = vmatprep.subr.bf16.mxu0 0
    %1246 = vmatpush1.bf16.msra.mxu0 %v1230
    %1247 = vmatprep.subr.bf16.mxu0 0
    %1248 = vmatpush1.bf16.msra.mxu0 %v1229
    %1249 = vmatprep.subr.bf16.mxu0 0
    %1250 = vmatpush1.bf16.msra.mxu0 %v1228
    %1251 = vmatprep.subr.bf16.mxu0 0
    %1252 = vmatpush1.bf16.msra.mxu0 %v1227
    %1253 = vmatprep.subr.bf16.mxu0 0
    %1254 = vmatpush1.bf16.msra.mxu0 %v1226
    %1255 = vmatprep.subr.bf16.mxu0 0
    %1256 = vmatpush1.bf16.msra.mxu0 %v1225
    %1257 = vmatprep.subr.bf16.mxu0 0
    %1258 = vmatpush2.bf16.msra.mxu0 0
    %1259 = vmatprep.subr.bf16.mxu0 0
    %1260 = vmatpush2.bf16.msra.mxu0 0
    %1261 = vmatprep.subr.bf16.mxu0 0
    %1262 = vmatpush2.bf16.msra.mxu0 0
    %1263 = vmatprep.subr.bf16.mxu0 0
    %1264 = vmatpush2.bf16.msra.mxu0 0
    %1265 = vmatprep.subr.bf16.mxu0 0
    %1266 = vmatpush2.bf16.msra.mxu0 0
    %1267 = vmatprep.subr.bf16.mxu0 0
    %1268 = vmatpush2.bf16.msra.mxu0 0
    %1269 = vmatprep.subr.bf16.mxu0 0
    %1270 = vmatpush2.bf16.msra.mxu0 0
    %1271 = vmatprep.subr.bf16.mxu0 0
    %1272 = vmatpush2.bf16.msra.mxu0 0
    %1273 = vmatprep.mubr.bf16.mxu0 0
    %1274 = vmatmul.mubr.bf16.gmra.mxu0 %v1171
    %v1275 = vpop.f32.mrf.mxu0
    %v1276 = vadd.f32 %v1192, %v1275
    %v1277 = vpop.f32.mrf.mxu0
    %v1278 = vpop.f32.mrf.mxu0
    %v1279 = vadd.f32 %v1192, %v1278
    %v1280 = vpop.f32.mrf.mxu0
    %1281 = vmatprep.mubr.bf16.mxu0 0
    %1282 = vmatmul.mubr.bf16.gmra.mxu0 %v1172
    %v1283 = vpop.f32.mrf.mxu0
    %v1284 = vadd.f32 %v1192, %v1283
    %v1285 = vpop.f32.mrf.mxu0
    %v1286 = vpop.f32.mrf.mxu0
    %v1287 = vadd.f32 %v1192, %v1286
    %v1288 = vpop.f32.mrf.mxu0
    %1289 = vmatprep.mubr.bf16.mxu0 0
    %1290 = vmatmul.mubr.bf16.gmra.mxu0 %v1173
    %v1291 = vpop.f32.mrf.mxu0
    %v1292 = vadd.f32 %v1192, %v1291
    %v1293 = vpop.f32.mrf.mxu0
    %v1294 = vpop.f32.mrf.mxu0
    %v1295 = vadd.f32 %v1192, %v1294
    %v1296 = vpop.f32.mrf.mxu0
    %1297 = vmatprep.mubr.bf16.mxu0 0
    %1298 = vmatmul.mubr.bf16.gmra.mxu0 %v1174
    %v1299 = vpop.f32.mrf.mxu0
    %v1300 = vadd.f32 %v1192, %v1299
    %v1301 = vpop.f32.mrf.mxu0
    %v1302 = vpop.f32.mrf.mxu0
    %v1303 = vadd.f32 %v1192, %v1302
    %v1304 = vpop.f32.mrf.mxu0
    %1305 = vmatprep.mubr.bf16.mxu0 0
    %1306 = vmatmul.mubr.bf16.gmra.mxu0 %v1175
    %v1307 = vpop.f32.mrf.mxu0
    %v1308 = vadd.f32 %v1192, %v1307
    %v1309 = vpop.f32.mrf.mxu0
    %v1310 = vpop.f32.mrf.mxu0
    %v1311 = vadd.f32 %v1192, %v1310
    %v1312 = vpop.f32.mrf.mxu0
    %1313 = vmatprep.mubr.bf16.mxu0 0
    %1314 = vmatmul.mubr.bf16.gmra.mxu0 %v1176
    %v1315 = vpop.f32.mrf.mxu0
    %v1316 = vadd.f32 %v1192, %v1315
    %v1317 = vpop.f32.mrf.mxu0
    %v1318 = vpop.f32.mrf.mxu0
    %v1319 = vadd.f32 %v1192, %v1318
    %v1320 = vpop.f32.mrf.mxu0
    %1321 = vmatprep.mubr.bf16.mxu0 0
    %1322 = vmatmul.mubr.bf16.gmra.mxu0 %v1177
    %v1323 = vpop.f32.mrf.mxu0
    %v1324 = vadd.f32 %v1192, %v1323
    %v1325 = vpop.f32.mrf.mxu0
    %v1326 = vpop.f32.mrf.mxu0
    %v1327 = vadd.f32 %v1192, %v1326
    %v1328 = vpop.f32.mrf.mxu0
    %1329 = vmatprep.mubr.bf16.mxu0 0
    %1330 = vmatmul.mubr.bf16.gmra.mxu0 %v1178
    %v1331 = vpop.f32.mrf.mxu0
    %v1332 = vadd.f32 %v1192, %v1331
    %v1333 = vpop.f32.mrf.mxu0
    %v1334 = vpop.f32.mrf.mxu0
    %v1335 = vadd.f32 %v1192, %v1334
    %v1336 = vpop.f32.mrf.mxu0
    %1337 = vmatprep.mubr.bf16.mxu0 0
    %1338 = vmatmul.mubr.bf16.gmra.mxu0 %v1179
    %v1339 = vpop.f32.mrf.mxu0
    %v1340 = vadd.f32 %v1192, %v1339
    %v1341 = vpop.f32.mrf.mxu0
    %v1342 = vpop.f32.mrf.mxu0
    %v1343 = vadd.f32 %v1192, %v1342
    %v1344 = vpop.f32.mrf.mxu0
    %1345 = vmatprep.mubr.bf16.mxu0 0
    %1346 = vmatmul.mubr.bf16.gmra.mxu0 %v1180
    %v1347 = vpop.f32.mrf.mxu0
    %v1348 = vadd.f32 %v1192, %v1347
    %v1349 = vpop.f32.mrf.mxu0
    %v1350 = vpop.f32.mrf.mxu0
    %v1351 = vadd.f32 %v1192, %v1350
    %v1352 = vpop.f32.mrf.mxu0
    %1353 = vmatprep.mubr.bf16.mxu0 0
    %1354 = vmatmul.mubr.bf16.gmra.mxu0 %v1181
    %v1355 = vpop.f32.mrf.mxu0
    %v1356 = vadd.f32 %v1192, %v1355
    %v1357 = vpop.f32.mrf.mxu0
    %v1358 = vpop.f32.mrf.mxu0
    %v1359 = vadd.f32 %v1192, %v1358
    %v1360 = vpop.f32.mrf.mxu0
    %1361 = vmatprep.mubr.bf16.mxu0 0
    %1362 = vmatmul.mubr.bf16.gmra.mxu0 %v1182
    %v1363 = vpop.f32.mrf.mxu0
    %v1364 = vadd.f32 %v1192, %v1363
    %v1365 = vpop.f32.mrf.mxu0
    %v1366 = vpop.f32.mrf.mxu0
    %v1367 = vadd.f32 %v1192, %v1366
    %v1368 = vpop.f32.mrf.mxu0
    %1369 = vmatprep.mubr.bf16.mxu0 0
    %1370 = vmatmul.mubr.bf16.gmra.mxu0 %v1183
    %v1371 = vpop.f32.mrf.mxu0
    %v1372 = vadd.f32 %v1192, %v1371
    %v1373 = vpop.f32.mrf.mxu0
    %v1374 = vpop.f32.mrf.mxu0
    %v1375 = vadd.f32 %v1192, %v1374
    %v1376 = vpop.f32.mrf.mxu0
    %1377 = vmatprep.mubr.bf16.mxu0 0
    %1378 = vmatmul.mubr.bf16.gmra.mxu0 %v1184
    %v1379 = vpop.f32.mrf.mxu0
    %v1380 = vadd.f32 %v1192, %v1379
    %v1381 = vpop.f32.mrf.mxu0
    %v1382 = vpop.f32.mrf.mxu0
    %v1383 = vadd.f32 %v1192, %v1382
    %v1384 = vpop.f32.mrf.mxu0
    %1385 = vmatprep.mubr.bf16.mxu0 0
    %1386 = vmatmul.mubr.bf16.gmra.mxu0 %v1185
    %v1387 = vpop.f32.mrf.mxu0
    %v1388 = vadd.f32 %v1192, %v1387
    %v1389 = vpop.f32.mrf.mxu0
    %v1390 = vpop.f32.mrf.mxu0
    %v1391 = vadd.f32 %v1192, %v1390
    %v1392 = vpop.f32.mrf.mxu0
    %1393 = vmatprep.mubr.bf16.mxu0 0
    %1394 = vmatmul.mubr.bf16.gmra.mxu0 %v1186
    %v1395 = vpop.f32.mrf.mxu0
    %v1396 = vadd.f32 %v1192, %v1395
    %v1397 = vpop.f32.mrf.mxu0
    %v1398 = vpop.f32.mrf.mxu0
    %v1399 = vadd.f32 %v1192, %v1398
    %v1400 = vpop.f32.mrf.mxu0
    %1401 = vdwg.mxu0
    %v1402 = vmul.f32 %v1276, %v184
    %v1403 = vmul.f32 %v1279, %v185
    %v1404 = vmul.f32 %v1284, %v186
    %v1405 = vmul.f32 %v1287, %v187
    %v1406 = vmul.f32 %v1292, %v188
    %v1407 = vmul.f32 %v1295, %v189
    %v1408 = vmul.f32 %v1300, %v190
    %v1409 = vmul.f32 %v1303, %v191
    %v1410 = vmul.f32 %v1308, %v192
    %v1411 = vmul.f32 %v1311, %v193
    %v1412 = vmul.f32 %v1316, %v194
    %v1413 = vmul.f32 %v1319, %v195
    %v1414 = vmul.f32 %v1324, %v196
    %v1415 = vmul.f32 %v1327, %v197
    %v1416 = vmul.f32 %v1332, %v198
    %v1417 = vmul.f32 %v1335, %v199
    %v1418 = vmul.f32 %v1340, %v200
    %v1419 = vmul.f32 %v1343, %v201
    %v1420 = vmul.f32 %v1348, %v202
    %v1421 = vmul.f32 %v1351, %v203
    %v1422 = vmul.f32 %v1356, %v204
    %v1423 = vmul.f32 %v1359, %v205
    %v1424 = vmul.f32 %v1364, %v206
    %v1425 = vmul.f32 %v1367, %v207
    %v1426 = vmul.f32 %v1372, %v208
    %v1427 = vmul.f32 %v1375, %v209
    %v1428 = vmul.f32 %v1380, %v210
    %v1429 = vmul.f32 %v1383, %v211
    %v1430 = vmul.f32 %v1388, %v212
    %v1431 = vmul.f32 %v1391, %v213
    %v1432 = vmul.f32 %v1396, %v214
    %v1433 = vmul.f32 %v1399, %v215
    %v1434 = vadd.f32 %v1402, %v1403
    %v1435 = vadd.f32 %v1434, %v1404
    %v1436 = vadd.f32 %v1435, %v1405
    %v1437 = vadd.f32 %v1436, %v1406
    %v1438 = vadd.f32 %v1437, %v1407
    %v1439 = vadd.f32 %v1438, %v1408
    %v1440 = vadd.f32 %v1439, %v1409
    %v1441 = vadd.f32 %v1440, %v1410
    %v1442 = vadd.f32 %v1441, %v1411
    %v1443 = vadd.f32 %v1442, %v1412
    %v1444 = vadd.f32 %v1443, %v1413
    %v1445 = vadd.f32 %v1444, %v1414
    %v1446 = vadd.f32 %v1445, %v1415
    %v1447 = vadd.f32 %v1446, %v1416
    %v1448 = vadd.f32 %v1447, %v1417
    %v1449 = vadd.f32 %v1448, %v1418
    %v1450 = vadd.f32 %v1449, %v1419
    %v1451 = vadd.f32 %v1450, %v1420
    %v1452 = vadd.f32 %v1451, %v1421
    %v1453 = vadd.f32 %v1452, %v1422
    %v1454 = vadd.f32 %v1453, %v1423
    %v1455 = vadd.f32 %v1454, %v1424
    %v1456 = vadd.f32 %v1455, %v1425
    %v1457 = vadd.f32 %v1456, %v1426
    %v1458 = vadd.f32 %v1457, %v1427
    %v1459 = vadd.f32 %v1458, %v1428
    %v1460 = vadd.f32 %v1459, %v1429
    %v1461 = vadd.f32 %v1460, %v1430
    %v1462 = vadd.f32 %v1461, %v1431
    %v1463 = vadd.f32 %v1462, %v1432
    %v1464 = vadd.f32 %v1463, %v1433
    %v1465 = vrot.slane %v1464, 4
    %v1466 = vadd.f32 %v1464, %v1465
    %v1467 = vrot.slane %v1466, 2
    %v1468 = vadd.f32 %v1466, %v1467
    %v1469 = vrot.slane %v1468, 1
    %v1470 = vadd.f32 %v1468, %v1469
    %v1471 = vmul.f32 %v1470, 0.004
    %v1472 = vmul.f32 %v1402, %v1402
    %v1473 = vmul.f32 %v1403, %v1403
    %v1474 = vmul.f32 %v1404, %v1404
    %v1475 = vmul.f32 %v1405, %v1405
    %v1476 = vmul.f32 %v1406, %v1406
    %v1477 = vmul.f32 %v1407, %v1407
    %v1478 = vmul.f32 %v1408, %v1408
    %v1479 = vmul.f32 %v1409, %v1409
    %v1480 = vmul.f32 %v1410, %v1410
    %v1481 = vmul.f32 %v1411, %v1411
    %v1482 = vmul.f32 %v1412, %v1412
    %v1483 = vmul.f32 %v1413, %v1413
    %v1484 = vmul.f32 %v1414, %v1414
    %v1485 = vmul.f32 %v1415, %v1415
    %v1486 = vmul.f32 %v1416, %v1416
    %v1487 = vmul.f32 %v1417, %v1417
    %v1488 = vmul.f32 %v1418, %v1418
    %v1489 = vmul.f32 %v1419, %v1419
    %v1490 = vmul.f32 %v1420, %v1420
    %v1491 = vmul.f32 %v1421, %v1421
    %v1492 = vmul.f32 %v1422, %v1422
    %v1493 = vmul.f32 %v1423, %v1423
    %v1494 = vmul.f32 %v1424, %v1424
    %v1495 = vmul.f32 %v1425, %v1425
    %v1496 = vmul.f32 %v1426, %v1426
    %v1497 = vmul.f32 %v1427, %v1427
    %v1498 = vmul.f32 %v1428, %v1428
    %v1499 = vmul.f32 %v1429, %v1429
    %v1500 = vmul.f32 %v1430, %v1430
    %v1501 = vmul.f32 %v1431, %v1431
    %v1502 = vmul.f32 %v1432, %v1432
    %v1503 = vmul.f32 %v1433, %v1433
    %v1504 = vadd.f32 %v1472, %v1473
    %v1505 = vadd.f32 %v1504, %v1474
    %v1506 = vadd.f32 %v1505, %v1475
    %v1507 = vadd.f32 %v1506, %v1476
    %v1508 = vadd.f32 %v1507, %v1477
    %v1509 = vadd.f32 %v1508, %v1478
    %v1510 = vadd.f32 %v1509, %v1479
    %v1511 = vadd.f32 %v1510, %v1480
    %v1512 = vadd.f32 %v1511, %v1481
    %v1513 = vadd.f32 %v1512, %v1482
    %v1514 = vadd.f32 %v1513, %v1483
    %v1515 = vadd.f32 %v1514, %v1484
    %v1516 = vadd.f32 %v1515, %v1485
    %v1517 = vadd.f32 %v1516, %v1486
    %v1518 = vadd.f32 %v1517, %v1487
    %v1519 = vadd.f32 %v1518, %v1488
    %v1520 = vadd.f32 %v1519, %v1489
    %v1521 = vadd.f32 %v1520, %v1490
    %v1522 = vadd.f32 %v1521, %v1491
    %v1523 = vadd.f32 %v1522, %v1492
    %v1524 = vadd.f32 %v1523, %v1493
    %v1525 = vadd.f32 %v1524, %v1494
    %v1526 = vadd.f32 %v1525, %v1495
    %v1527 = vadd.f32 %v1526, %v1496
    %v1528 = vadd.f32 %v1527, %v1497
    %v1529 = vadd.f32 %v1528, %v1498
    %v1530 = vadd.f32 %v1529, %v1499
    %v1531 = vadd.f32 %v1530, %v1500
    %v1532 = vadd.f32 %v1531, %v1501
    %v1533 = vadd.f32 %v1532, %v1502
    %v1534 = vadd.f32 %v1533, %v1503
    %v1535 = vrot.slane %v1534, 4
    %v1536 = vadd.f32 %v1534, %v1535
    %v1537 = vrot.slane %v1536, 2
    %v1538 = vadd.f32 %v1536, %v1537
    %v1539 = vrot.slane %v1538, 1
    %v1540 = vadd.f32 %v1538, %v1539
    %v1541 = vmul.f32 %v1540, 0.004
    %v1542 = vmul.f32 %v1471, %v1471
    %v1543 = vsub.f32 %v1541, %v1542
    %v1544 = vmax.f32 %v1543, 0.0
    %v1545 = vadd.f32 %v1544, 1e-05
    %v1546 = vrsqrt.pop %v1545
    %v1547 = vmul.f32 %v1187, %v1546
    %v1548 = vmul.f32 %v1471, %v1547
    %v1549 = vsub.f32 %v1188, %v1548
    %v1550 = vlaneseq
    %v1551 = vshrl.u32 %v1550, 7
    %v1552 = vsub.s32 0, %v1551
    %v1553 = vrot.slane %v1547, %v1552
    %v1554 = vmul.f32 %v1276, %v1553
    %v1555 = vmul.f32 %v1279, %v1553
    %v1556 = vmul.f32 %v1284, %v1553
    %v1557 = vmul.f32 %v1287, %v1553
    %v1558 = vmul.f32 %v1292, %v1553
    %v1559 = vmul.f32 %v1295, %v1553
    %v1560 = vmul.f32 %v1300, %v1553
    %v1561 = vmul.f32 %v1303, %v1553
    %v1562 = vmul.f32 %v1308, %v1553
    %v1563 = vmul.f32 %v1311, %v1553
    %v1564 = vmul.f32 %v1316, %v1553
    %v1565 = vmul.f32 %v1319, %v1553
    %v1566 = vmul.f32 %v1324, %v1553
    %v1567 = vmul.f32 %v1327, %v1553
    %v1568 = vmul.f32 %v1332, %v1553
    %v1569 = vmul.f32 %v1335, %v1553
    %v1570 = vmul.f32 %v1340, %v1553
    %v1571 = vmul.f32 %v1343, %v1553
    %v1572 = vmul.f32 %v1348, %v1553
    %v1573 = vmul.f32 %v1351, %v1553
    %v1574 = vmul.f32 %v1356, %v1553
    %v1575 = vmul.f32 %v1359, %v1553
    %v1576 = vmul.f32 %v1364, %v1553
    %v1577 = vmul.f32 %v1367, %v1553
    %v1578 = vmul.f32 %v1372, %v1553
    %v1579 = vmul.f32 %v1375, %v1553
    %v1580 = vmul.f32 %v1380, %v1553
    %v1581 = vmul.f32 %v1383, %v1553
    %v1582 = vmul.f32 %v1388, %v1553
    %v1583 = vmul.f32 %v1391, %v1553
    %v1584 = vmul.f32 %v1396, %v1553
    %v1585 = vmul.f32 %v1399, %v1553
    %v1586 = vlaneseq
    %v1587 = vshrl.u32 %v1586, 7
    %v1588 = vsub.s32 0, %v1587
    %v1589 = vrot.slane %v1549, %v1588
    %v1590 = vadd.f32 %v1554, %v1589
    %v1591 = vadd.f32 %v1555, %v1589
    %v1592 = vadd.f32 %v1556, %v1589
    %v1593 = vadd.f32 %v1557, %v1589
    %v1594 = vadd.f32 %v1558, %v1589
    %v1595 = vadd.f32 %v1559, %v1589
    %v1596 = vadd.f32 %v1560, %v1589
    %v1597 = vadd.f32 %v1561, %v1589
    %v1598 = vadd.f32 %v1562, %v1589
    %v1599 = vadd.f32 %v1563, %v1589
    %v1600 = vadd.f32 %v1564, %v1589
    %v1601 = vadd.f32 %v1565, %v1589
    %v1602 = vadd.f32 %v1566, %v1589
    %v1603 = vadd.f32 %v1567, %v1589
    %v1604 = vadd.f32 %v1568, %v1589
    %v1605 = vadd.f32 %v1569, %v1589
    %v1606 = vadd.f32 %v1570, %v1589
    %v1607 = vadd.f32 %v1571, %v1589
    %v1608 = vadd.f32 %v1572, %v1589
    %v1609 = vadd.f32 %v1573, %v1589
    %v1610 = vadd.f32 %v1574, %v1589
    %v1611 = vadd.f32 %v1575, %v1589
    %v1612 = vadd.f32 %v1576, %v1589
    %v1613 = vadd.f32 %v1577, %v1589
    %v1614 = vadd.f32 %v1578, %v1589
    %v1615 = vadd.f32 %v1579, %v1589
    %v1616 = vadd.f32 %v1580, %v1589
    %v1617 = vadd.f32 %v1581, %v1589
    %v1618 = vadd.f32 %v1582, %v1589
    %v1619 = vadd.f32 %v1583, %v1589
    %v1620 = vadd.f32 %v1584, %v1589
    %v1621 = vadd.f32 %v1585, %v1589
    %v1622 = vmax.f32 %v1590, 0.0
    %v1623 = vmax.f32 %v1591, 0.0
    %v1624 = vmax.f32 %v1592, 0.0
    %v1625 = vmax.f32 %v1593, 0.0
    %v1626 = vmax.f32 %v1594, 0.0
    %v1627 = vmax.f32 %v1595, 0.0
    %v1628 = vmax.f32 %v1596, 0.0
    %v1629 = vmax.f32 %v1597, 0.0
    %v1630 = vmax.f32 %v1598, 0.0
    %v1631 = vmax.f32 %v1599, 0.0
    %v1632 = vmax.f32 %v1600, 0.0
    %v1633 = vmax.f32 %v1601, 0.0
    %v1634 = vmax.f32 %v1602, 0.0
    %v1635 = vmax.f32 %v1603, 0.0
    %v1636 = vmax.f32 %v1604, 0.0
    %v1637 = vmax.f32 %v1605, 0.0
    %v1638 = vmax.f32 %v1606, 0.0
    %v1639 = vmax.f32 %v1607, 0.0
    %v1640 = vmax.f32 %v1608, 0.0
    %v1641 = vmax.f32 %v1609, 0.0
    %v1642 = vmax.f32 %v1610, 0.0
    %v1643 = vmax.f32 %v1611, 0.0
    %v1644 = vmax.f32 %v1612, 0.0
    %v1645 = vmax.f32 %v1613, 0.0
    %v1646 = vmax.f32 %v1614, 0.0
    %v1647 = vmax.f32 %v1615, 0.0
    %v1648 = vmax.f32 %v1616, 0.0
    %v1649 = vmax.f32 %v1617, 0.0
    %v1650 = vmax.f32 %v1618, 0.0
    %v1651 = vmax.f32 %v1619, 0.0
    %v1652 = vmax.f32 %v1620, 0.0
    %v1653 = vmax.f32 %v1621, 0.0
    %v1654 = vld [vmem:[#allocation5 + $0xc0] sm:$0xf]
    %v1655 = vld [vmem:[#allocation5 + $0xc4] sm:$0xf]
    %v1656 = vld [vmem:[#allocation5 + $0xc8] sm:$0xf]
    %v1657 = vld [vmem:[#allocation5 + $0xcc] sm:$0xf]
    %v1658 = vld [vmem:[#allocation5 + $0xd0] sm:$0xf]
    %v1659 = vld [vmem:[#allocation5 + $0xd4] sm:$0xf]
    %v1660 = vld [vmem:[#allocation5 + $0xd8] sm:$0xf]
    %v1661 = vld [vmem:[#allocation5 + $0xdc] sm:$0xf]
    %v1662 = vld [vmem:[#allocation5 + $0xe0] sm:$0xf]
    %v1663 = vld [vmem:[#allocation5 + $0xe4] sm:$0xf]
    %v1664 = vld [vmem:[#allocation5 + $0xe8] sm:$0xf]
    %v1665 = vld [vmem:[#allocation5 + $0xec] sm:$0xf]
    %v1666 = vld [vmem:[#allocation5 + $0xf0] sm:$0xf]
    %v1667 = vld [vmem:[#allocation5 + $0xf4] sm:$0xf]
    %v1668 = vld [vmem:[#allocation5 + $0xf8] sm:$0xf]
    %v1669 = vld [vmem:[#allocation5 + $0xfc] sm:$0xf]
    %v1670 = vld [vmem:[#allocation7 + $0x7] sm:$0x1]
    %v1671 = vpack.c.bf16 %v1623, %v1622
    %v1672 = vpack.c.bf16 %v1625, %v1624
    %v1673 = vpack.c.bf16 %v1627, %v1626
    %v1674 = vpack.c.bf16 %v1629, %v1628
    %v1675 = vpack.c.bf16 %v1631, %v1630
    %v1676 = vpack.c.bf16 %v1633, %v1632
    %v1677 = vpack.c.bf16 %v1635, %v1634
    %v1678 = vpack.c.bf16 %v1637, %v1636
    %v1679 = vpack.c.bf16 %v1639, %v1638
    %v1680 = vpack.c.bf16 %v1641, %v1640
    %v1681 = vpack.c.bf16 %v1643, %v1642
    %v1682 = vpack.c.bf16 %v1645, %v1644
    %v1683 = vpack.c.bf16 %v1647, %v1646
    %v1684 = vpack.c.bf16 %v1649, %v1648
    %v1685 = vpack.c.bf16 %v1651, %v1650
    %v1686 = vpack.c.bf16 %v1653, %v1652
    %v1687 = vlaneseq
    %v1688 = vshrl.u32 %v1687, 7
    %v1689 = vsub.s32 0, %v1688
    %v1690 = vrot.slane %v1670, %v1689
    %v1707 = vunpack.c.l.b16 %v1654
    %v1708 = vunpack.c.l.b16 %v1655
    %v1709 = vunpack.c.l.b16 %v1656
    %v1710 = vunpack.c.l.b16 %v1657
    %v1711 = vunpack.c.l.b16 %v1658
    %v1712 = vunpack.c.l.b16 %v1659
    %v1713 = vunpack.c.l.b16 %v1660
    %v1714 = vunpack.c.l.b16 %v1661
    %v1715 = vunpack.c.l.b16 %v1662
    %v1716 = vunpack.c.l.b16 %v1663
    %v1717 = vunpack.c.l.b16 %v1664
    %v1718 = vunpack.c.l.b16 %v1665
    %v1719 = vunpack.c.l.b16 %v1666
    %v1720 = vunpack.c.l.b16 %v1667
    %v1721 = vunpack.c.l.b16 %v1668
    %v1722 = vunpack.c.l.b16 %v1669
    %v1723 = vpack.c.b16 %v1708, %v1707
    %v1724 = vpack.c.b16 %v1710, %v1709
    %v1725 = vpack.c.b16 %v1712, %v1711
    %v1726 = vpack.c.b16 %v1714, %v1713
    %v1727 = vpack.c.b16 %v1716, %v1715
    %v1728 = vpack.c.b16 %v1718, %v1717
    %v1729 = vpack.c.b16 %v1720, %v1719
    %v1730 = vpack.c.b16 %v1722, %v1721
    %1739 = vmatprep.subr.bf16.mxu0 0
    %1740 = vmatpush1.bf16.msra.mxu0 %v1730
    %1741 = vmatprep.subr.bf16.mxu0 0
    %1742 = vmatpush1.bf16.msra.mxu0 %v1729
    %1743 = vmatprep.subr.bf16.mxu0 0
    %1744 = vmatpush1.bf16.msra.mxu0 %v1728
    %1745 = vmatprep.subr.bf16.mxu0 0
    %1746 = vmatpush1.bf16.msra.mxu0 %v1727
    %1747 = vmatprep.subr.bf16.mxu0 0
    %1748 = vmatpush1.bf16.msra.mxu0 %v1726
    %1749 = vmatprep.subr.bf16.mxu0 0
    %1750 = vmatpush1.bf16.msra.mxu0 %v1725
    %1751 = vmatprep.subr.bf16.mxu0 0
    %1752 = vmatpush1.bf16.msra.mxu0 %v1724
    %1753 = vmatprep.subr.bf16.mxu0 0
    %1754 = vmatpush1.bf16.msra.mxu0 %v1723
    %1755 = vmatprep.subr.bf16.mxu0 0
    %1756 = vmatpush2.bf16.msra.mxu0 0
    %1757 = vmatprep.subr.bf16.mxu0 0
    %1758 = vmatpush2.bf16.msra.mxu0 0
    %1759 = vmatprep.subr.bf16.mxu0 0
    %1760 = vmatpush2.bf16.msra.mxu0 0
    %1761 = vmatprep.subr.bf16.mxu0 0
    %1762 = vmatpush2.bf16.msra.mxu0 0
    %1763 = vmatprep.subr.bf16.mxu0 0
    %1764 = vmatpush2.bf16.msra.mxu0 0
    %1765 = vmatprep.subr.bf16.mxu0 0
    %1766 = vmatpush2.bf16.msra.mxu0 0
    %1767 = vmatprep.subr.bf16.mxu0 0
    %1768 = vmatpush2.bf16.msra.mxu0 0
    %1769 = vmatprep.subr.bf16.mxu0 0
    %1770 = vmatpush2.bf16.msra.mxu0 0
    %1771 = vmatprep.mubr.bf16.mxu0 0
    %1772 = vmatmul.mubr.bf16.gmra.mxu0 %v1671
    %v1773 = vpop.f32.mrf.mxu0
    %v1774 = vadd.f32 %v1690, %v1773
    %v1775 = vpop.f32.mrf.mxu0
    %v1776 = vpop.f32.mrf.mxu0
    %v1777 = vadd.f32 %v1690, %v1776
    %v1778 = vpop.f32.mrf.mxu0
    %1779 = vmatprep.mubr.bf16.mxu0 0
    %1780 = vmatmul.mubr.bf16.gmra.mxu0 %v1672
    %v1781 = vpop.f32.mrf.mxu0
    %v1782 = vadd.f32 %v1690, %v1781
    %v1783 = vpop.f32.mrf.mxu0
    %v1784 = vpop.f32.mrf.mxu0
    %v1785 = vadd.f32 %v1690, %v1784
    %v1786 = vpop.f32.mrf.mxu0
    %1787 = vmatprep.mubr.bf16.mxu0 0
    %1788 = vmatmul.mubr.bf16.gmra.mxu0 %v1673
    %v1789 = vpop.f32.mrf.mxu0
    %v1790 = vadd.f32 %v1690, %v1789
    %v1791 = vpop.f32.mrf.mxu0
    %v1792 = vpop.f32.mrf.mxu0
    %v1793 = vadd.f32 %v1690, %v1792
    %v1794 = vpop.f32.mrf.mxu0
    %1795 = vmatprep.mubr.bf16.mxu0 0
    %1796 = vmatmul.mubr.bf16.gmra.mxu0 %v1674
    %v1797 = vpop.f32.mrf.mxu0
    %v1798 = vadd.f32 %v1690, %v1797
    %v1799 = vpop.f32.mrf.mxu0
    %v1800 = vpop.f32.mrf.mxu0
    %v1801 = vadd.f32 %v1690, %v1800
    %v1802 = vpop.f32.mrf.mxu0
    %1803 = vmatprep.mubr.bf16.mxu0 0
    %1804 = vmatmul.mubr.bf16.gmra.mxu0 %v1675
    %v1805 = vpop.f32.mrf.mxu0
    %v1806 = vadd.f32 %v1690, %v1805
    %v1807 = vpop.f32.mrf.mxu0
    %v1808 = vpop.f32.mrf.mxu0
    %v1809 = vadd.f32 %v1690, %v1808
    %v1810 = vpop.f32.mrf.mxu0
    %1811 = vmatprep.mubr.bf16.mxu0 0
    %1812 = vmatmul.mubr.bf16.gmra.mxu0 %v1676
    %v1813 = vpop.f32.mrf.mxu0
    %v1814 = vadd.f32 %v1690, %v1813
    %v1815 = vpop.f32.mrf.mxu0
    %v1816 = vpop.f32.mrf.mxu0
    %v1817 = vadd.f32 %v1690, %v1816
    %v1818 = vpop.f32.mrf.mxu0
    %1819 = vmatprep.mubr.bf16.mxu0 0
    %1820 = vmatmul.mubr.bf16.gmra.mxu0 %v1677
    %v1821 = vpop.f32.mrf.mxu0
    %v1822 = vadd.f32 %v1690, %v1821
    %v1823 = vpop.f32.mrf.mxu0
    %v1824 = vpop.f32.mrf.mxu0
    %v1825 = vadd.f32 %v1690, %v1824
    %v1826 = vpop.f32.mrf.mxu0
    %1827 = vmatprep.mubr.bf16.mxu0 0
    %1828 = vmatmul.mubr.bf16.gmra.mxu0 %v1678
    %v1829 = vpop.f32.mrf.mxu0
    %v1830 = vadd.f32 %v1690, %v1829
    %v1831 = vpop.f32.mrf.mxu0
    %v1832 = vpop.f32.mrf.mxu0
    %v1833 = vadd.f32 %v1690, %v1832
    %v1834 = vpop.f32.mrf.mxu0
    %1835 = vmatprep.mubr.bf16.mxu0 0
    %1836 = vmatmul.mubr.bf16.gmra.mxu0 %v1679
    %v1837 = vpop.f32.mrf.mxu0
    %v1838 = vadd.f32 %v1690, %v1837
    %v1839 = vpop.f32.mrf.mxu0
    %v1840 = vpop.f32.mrf.mxu0
    %v1841 = vadd.f32 %v1690, %v1840
    %v1842 = vpop.f32.mrf.mxu0
    %1843 = vmatprep.mubr.bf16.mxu0 0
    %1844 = vmatmul.mubr.bf16.gmra.mxu0 %v1680
    %v1845 = vpop.f32.mrf.mxu0
    %v1846 = vadd.f32 %v1690, %v1845
    %v1847 = vpop.f32.mrf.mxu0
    %v1848 = vpop.f32.mrf.mxu0
    %v1849 = vadd.f32 %v1690, %v1848
    %v1850 = vpop.f32.mrf.mxu0
    %1851 = vmatprep.mubr.bf16.mxu0 0
    %1852 = vmatmul.mubr.bf16.gmra.mxu0 %v1681
    %v1853 = vpop.f32.mrf.mxu0
    %v1854 = vadd.f32 %v1690, %v1853
    %v1855 = vpop.f32.mrf.mxu0
    %v1856 = vpop.f32.mrf.mxu0
    %v1857 = vadd.f32 %v1690, %v1856
    %v1858 = vpop.f32.mrf.mxu0
    %1859 = vmatprep.mubr.bf16.mxu0 0
    %1860 = vmatmul.mubr.bf16.gmra.mxu0 %v1682
    %v1861 = vpop.f32.mrf.mxu0
    %v1862 = vadd.f32 %v1690, %v1861
    %v1863 = vpop.f32.mrf.mxu0
    %v1864 = vpop.f32.mrf.mxu0
    %v1865 = vadd.f32 %v1690, %v1864
    %v1866 = vpop.f32.mrf.mxu0
    %1867 = vmatprep.mubr.bf16.mxu0 0
    %1868 = vmatmul.mubr.bf16.gmra.mxu0 %v1683
    %v1869 = vpop.f32.mrf.mxu0
    %v1870 = vadd.f32 %v1690, %v1869
    %v1871 = vpop.f32.mrf.mxu0
    %v1872 = vpop.f32.mrf.mxu0
    %v1873 = vadd.f32 %v1690, %v1872
    %v1874 = vpop.f32.mrf.mxu0
    %1875 = vmatprep.mubr.bf16.mxu0 0
    %1876 = vmatmul.mubr.bf16.gmra.mxu0 %v1684
    %v1877 = vpop.f32.mrf.mxu0
    %v1878 = vadd.f32 %v1690, %v1877
    %v1879 = vpop.f32.mrf.mxu0
    %v1880 = vpop.f32.mrf.mxu0
    %v1881 = vadd.f32 %v1690, %v1880
    %v1882 = vpop.f32.mrf.mxu0
    %1883 = vmatprep.mubr.bf16.mxu0 0
    %1884 = vmatmul.mubr.bf16.gmra.mxu0 %v1685
    %v1885 = vpop.f32.mrf.mxu0
    %v1886 = vadd.f32 %v1690, %v1885
    %v1887 = vpop.f32.mrf.mxu0
    %v1888 = vpop.f32.mrf.mxu0
    %v1889 = vadd.f32 %v1690, %v1888
    %v1890 = vpop.f32.mrf.mxu0
    %1891 = vmatprep.mubr.bf16.mxu0 0
    %1892 = vmatmul.mubr.bf16.gmra.mxu0 %v1686
    %v1893 = vpop.f32.mrf.mxu0
    %v1894 = vadd.f32 %v1690, %v1893
    %v1895 = vpop.f32.mrf.mxu0
    %v1896 = vpop.f32.mrf.mxu0
    %v1897 = vadd.f32 %v1690, %v1896
    %v1898 = vpop.f32.mrf.mxu0
    %1899 = vdwg.mxu0
    %v1900 = vxor.u32 %v1774, 2147483648
    %v1901 = vxor.u32 %v1777, 2147483648
    %v1902 = vxor.u32 %v1782, 2147483648
    %v1903 = vxor.u32 %v1785, 2147483648
    %v1904 = vxor.u32 %v1790, 2147483648
    %v1905 = vxor.u32 %v1793, 2147483648
    %v1906 = vxor.u32 %v1798, 2147483648
    %v1907 = vxor.u32 %v1801, 2147483648
    %v1908 = vxor.u32 %v1806, 2147483648
    %v1909 = vxor.u32 %v1809, 2147483648
    %v1910 = vxor.u32 %v1814, 2147483648
    %v1911 = vxor.u32 %v1817, 2147483648
    %v1912 = vxor.u32 %v1822, 2147483648
    %v1913 = vxor.u32 %v1825, 2147483648
    %v1914 = vxor.u32 %v1830, 2147483648
    %v1915 = vxor.u32 %v1833, 2147483648
    %v1916 = vxor.u32 %v1838, 2147483648
    %v1917 = vxor.u32 %v1841, 2147483648
    %v1918 = vxor.u32 %v1846, 2147483648
    %v1919 = vxor.u32 %v1849, 2147483648
    %v1920 = vxor.u32 %v1854, 2147483648
    %v1921 = vxor.u32 %v1857, 2147483648
    %v1922 = vxor.u32 %v1862, 2147483648
    %v1923 = vxor.u32 %v1865, 2147483648
    %v1924 = vxor.u32 %v1870, 2147483648
    %v1925 = vxor.u32 %v1873, 2147483648
    %v1926 = vxor.u32 %v1878, 2147483648
    %v1927 = vxor.u32 %v1881, 2147483648
    %v1928 = vxor.u32 %v1886, 2147483648
    %v1929 = vxor.u32 %v1889, 2147483648
    %v1930 = vxor.u32 %v1894, 2147483648
    %v1931 = vxor.u32 %v1897, 2147483648
    %v1932 = vmul.f32 %v1900, 1.442695
    %v1933 = vpow.pop %v1932
    %v1934 = vmul.f32 %v1901, 1.442695
    %v1935 = vpow.pop %v1934
    %v1936 = vmul.f32 %v1902, 1.442695
    %v1937 = vpow.pop %v1936
    %v1938 = vmul.f32 %v1903, 1.442695
    %v1939 = vpow.pop %v1938
    %v1940 = vmul.f32 %v1904, 1.442695
    %v1941 = vpow.pop %v1940
    %v1942 = vmul.f32 %v1905, 1.442695
    %v1943 = vpow.pop %v1942
    %v1944 = vmul.f32 %v1906, 1.442695
    %v1945 = vpow.pop %v1944
    %v1946 = vmul.f32 %v1907, 1.442695
    %v1947 = vpow.pop %v1946
    %v1948 = vmul.f32 %v1908, 1.442695
    %v1949 = vpow.pop %v1948
    %v1950 = vmul.f32 %v1909, 1.442695
    %v1951 = vpow.pop %v1950
    %v1952 = vmul.f32 %v1910, 1.442695
    %v1953 = vpow.pop %v1952
    %v1954 = vmul.f32 %v1911, 1.442695
    %v1955 = vpow.pop %v1954
    %v1956 = vmul.f32 %v1912, 1.442695
    %v1957 = vpow.pop %v1956
    %v1958 = vmul.f32 %v1913, 1.442695
    %v1959 = vpow.pop %v1958
    %v1960 = vmul.f32 %v1914, 1.442695
    %v1961 = vpow.pop %v1960
    %v1962 = vmul.f32 %v1915, 1.442695
    %v1963 = vpow.pop %v1962
    %v1964 = vmul.f32 %v1916, 1.442695
    %v1965 = vpow.pop %v1964
    %v1966 = vmul.f32 %v1917, 1.442695
    %v1967 = vpow.pop %v1966
    %v1968 = vmul.f32 %v1918, 1.442695
    %v1969 = vpow.pop %v1968
    %v1970 = vmul.f32 %v1919, 1.442695
    %v1971 = vpow.pop %v1970
    %v1972 = vmul.f32 %v1920, 1.442695
    %v1973 = vpow.pop %v1972
    %v1974 = vmul.f32 %v1921, 1.442695
    %v1975 = vpow.pop %v1974
    %v1976 = vmul.f32 %v1922, 1.442695
    %v1977 = vpow.pop %v1976
    %v1978 = vmul.f32 %v1923, 1.442695
    %v1979 = vpow.pop %v1978
    %v1980 = vmul.f32 %v1924, 1.442695
    %v1981 = vpow.pop %v1980
    %v1982 = vmul.f32 %v1925, 1.442695
    %v1983 = vpow.pop %v1982
    %v1984 = vmul.f32 %v1926, 1.442695
    %v1985 = vpow.pop %v1984
    %v1986 = vmul.f32 %v1927, 1.442695
    %v1987 = vpow.pop %v1986
    %v1988 = vmul.f32 %v1928, 1.442695
    %v1989 = vpow.pop %v1988
    %v1990 = vmul.f32 %v1929, 1.442695
    %v1991 = vpow.pop %v1990
    %v1992 = vmul.f32 %v1930, 1.442695
    %v1993 = vpow.pop %v1992
    %v1994 = vmul.f32 %v1931, 1.442695
    %v1995 = vpow.pop %v1994
    %v1996 = vadd.f32 %v1933, 1.0
    %v1997 = vadd.f32 %v1935, 1.0
    %v1998 = vadd.f32 %v1937, 1.0
    %v1999 = vadd.f32 %v1939, 1.0
    %v2000 = vadd.f32 %v1941, 1.0
    %v2001 = vadd.f32 %v1943, 1.0
    %v2002 = vadd.f32 %v1945, 1.0
    %v2003 = vadd.f32 %v1947, 1.0
    %v2004 = vadd.f32 %v1949, 1.0
    %v2005 = vadd.f32 %v1951, 1.0
    %v2006 = vadd.f32 %v1953, 1.0
    %v2007 = vadd.f32 %v1955, 1.0
    %v2008 = vadd.f32 %v1957, 1.0
    %v2009 = vadd.f32 %v1959, 1.0
    %v2010 = vadd.f32 %v1961, 1.0
    %v2011 = vadd.f32 %v1963, 1.0
    %v2012 = vadd.f32 %v1965, 1.0
    %v2013 = vadd.f32 %v1967, 1.0
    %v2014 = vadd.f32 %v1969, 1.0
    %v2015 = vadd.f32 %v1971, 1.0
    %v2016 = vadd.f32 %v1973, 1.0
    %v2017 = vadd.f32 %v1975, 1.0
    %v2018 = vadd.f32 %v1977, 1.0
    %v2019 = vadd.f32 %v1979, 1.0
    %v2020 = vadd.f32 %v1981, 1.0
    %v2021 = vadd.f32 %v1983, 1.0
    %v2022 = vadd.f32 %v1985, 1.0
    %v2023 = vadd.f32 %v1987, 1.0
    %v2024 = vadd.f32 %v1989, 1.0
    %v2025 = vadd.f32 %v1991, 1.0
    %v2026 = vadd.f32 %v1993, 1.0
    %v2027 = vadd.f32 %v1995, 1.0
    %v2028 = vrcp.pop %v1996
    %v2029 = vmul.f32 1.0, %v2028
    %v2030 = vrcp.pop %v1997
    %v2031 = vmul.f32 1.0, %v2030
    %v2032 = vrcp.pop %v1998
    %v2033 = vmul.f32 1.0, %v2032
    %v2034 = vrcp.pop %v1999
    %v2035 = vmul.f32 1.0, %v2034
    %v2036 = vrcp.pop %v2000
    %v2037 = vmul.f32 1.0, %v2036
    %v2038 = vrcp.pop %v2001
    %v2039 = vmul.f32 1.0, %v2038
    %v2040 = vrcp.pop %v2002
    %v2041 = vmul.f32 1.0, %v2040
    %v2042 = vrcp.pop %v2003
    %v2043 = vmul.f32 1.0, %v2042
    %v2044 = vrcp.pop %v2004
    %v2045 = vmul.f32 1.0, %v2044
    %v2046 = vrcp.pop %v2005
    %v2047 = vmul.f32 1.0, %v2046
    %v2048 = vrcp.pop %v2006
    %v2049 = vmul.f32 1.0, %v2048
    %v2050 = vrcp.pop %v2007
    %v2051 = vmul.f32 1.0, %v2050
    %v2052 = vrcp.pop %v2008
    %v2053 = vmul.f32 1.0, %v2052
    %v2054 = vrcp.pop %v2009
    %v2055 = vmul.f32 1.0, %v2054
    %v2056 = vrcp.pop %v2010
    %v2057 = vmul.f32 1.0, %v2056
    %v2058 = vrcp.pop %v2011
    %v2059 = vmul.f32 1.0, %v2058
    %v2060 = vrcp.pop %v2012
    %v2061 = vmul.f32 1.0, %v2060
    %v2062 = vrcp.pop %v2013
    %v2063 = vmul.f32 1.0, %v2062
    %v2064 = vrcp.pop %v2014
    %v2065 = vmul.f32 1.0, %v2064
    %v2066 = vrcp.pop %v2015
    %v2067 = vmul.f32 1.0, %v2066
    %v2068 = vrcp.pop %v2016
    %v2069 = vmul.f32 1.0, %v2068
    %v2070 = vrcp.pop %v2017
    %v2071 = vmul.f32 1.0, %v2070
    %v2072 = vrcp.pop %v2018
    %v2073 = vmul.f32 1.0, %v2072
    %v2074 = vrcp.pop %v2019
    %v2075 = vmul.f32 1.0, %v2074
    %v2076 = vrcp.pop %v2020
    %v2077 = vmul.f32 1.0, %v2076
    %v2078 = vrcp.pop %v2021
    %v2079 = vmul.f32 1.0, %v2078
    %v2080 = vrcp.pop %v2022
    %v2081 = vmul.f32 1.0, %v2080
    %v2082 = vrcp.pop %v2023
    %v2083 = vmul.f32 1.0, %v2082
    %v2084 = vrcp.pop %v2024
    %v2085 = vmul.f32 1.0, %v2084
    %v2086 = vrcp.pop %v2025
    %v2087 = vmul.f32 1.0, %v2086
    %v2088 = vrcp.pop %v2026
    %v2089 = vmul.f32 1.0, %v2088
    %v2090 = vrcp.pop %v2027
    %v2091 = vmul.f32 1.0, %v2090
    %2092 = vst [vmem:[#allocation8] sm:$0xff] %v2029
    %2093 = vst [vmem:[#allocation8 + $0x8] sm:$0xff] %v2031
    %2094 = vst [vmem:[#allocation8 + $0x10] sm:$0xff] %v2033
    %2095 = vst [vmem:[#allocation8 + $0x18] sm:$0xff] %v2035
    %2096 = vst [vmem:[#allocation8 + $0x20] sm:$0xff] %v2037
    %2097 = vst [vmem:[#allocation8 + $0x28] sm:$0xff] %v2039
    %2098 = vst [vmem:[#allocation8 + $0x30] sm:$0xff] %v2041
    %2099 = vst [vmem:[#allocation8 + $0x38] sm:$0xff] %v2043
    %2100 = vst [vmem:[#allocation8 + $0x40] sm:$0xff] %v2045
    %2101 = vst [vmem:[#allocation8 + $0x48] sm:$0xff] %v2047
    %2102 = vst [vmem:[#allocation8 + $0x50] sm:$0xff] %v2049
    %2103 = vst [vmem:[#allocation8 + $0x58] sm:$0xff] %v2051
    %2104 = vst [vmem:[#allocation8 + $0x60] sm:$0xff] %v2053
    %2105 = vst [vmem:[#allocation8 + $0x68] sm:$0xff] %v2055
    %2106 = vst [vmem:[#allocation8 + $0x70] sm:$0xff] %v2057
    %2107 = vst [vmem:[#allocation8 + $0x78] sm:$0xff] %v2059
    %2108 = vst [vmem:[#allocation8 + $0x80] sm:$0xff] %v2061
    %2109 = vst [vmem:[#allocation8 + $0x88] sm:$0xff] %v2063
    %2110 = vst [vmem:[#allocation8 + $0x90] sm:$0xff] %v2065
    %2111 = vst [vmem:[#allocation8 + $0x98] sm:$0xff] %v2067
    %2112 = vst [vmem:[#allocation8 + $0xa0] sm:$0xff] %v2069
    %2113 = vst [vmem:[#allocation8 + $0xa8] sm:$0xff] %v2071
    %2114 = vst [vmem:[#allocation8 + $0xb0] sm:$0xff] %v2073
    %2115 = vst [vmem:[#allocation8 + $0xb8] sm:$0xff] %v2075
    %2116 = vst [vmem:[#allocation8 + $0xc0] sm:$0xff] %v2077
    %2117 = vst [vmem:[#allocation8 + $0xc8] sm:$0xff] %v2079
    %2118 = vst [vmem:[#allocation8 + $0xd0] sm:$0xff] %v2081
    %2119 = vst [vmem:[#allocation8 + $0xd8] sm:$0xff] %v2083
    %2120 = vst [vmem:[#allocation8 + $0xe0] sm:$0xff] %v2085
    %2121 = vst [vmem:[#allocation8 + $0xe8] sm:$0xff] %v2087
    %2122 = vst [vmem:[#allocation8 + $0xf0] sm:$0xff] %v2089
    %2123 = vst [vmem:[#allocation8 + $0xf8] sm:$0xff] %v2091
    // Predicated region
    $region26: #{tpu_custom_call.1} parent=1 // pred_check
      _
    $region27: #{tpu_custom_call.1} parent=1 // pred_check_branch
      %2125 = sbr.rel (0) target = $region29
    $region28: #{tpu_custom_call.1} parent=1 // pred_region
      %s2127 = ssub.s32 4096, 4096
      %2128 = vsyncadd [#allocation4], %s2127
      %s2129 = sshll.u32 [#allocation8], 4
      %s2130 = int_to_ptr.vmem [resolvable:$true] %s2129
      %2135 = dma.vmem_to_hbm [thread:$0]  %s2130, 4096, %s3, [#allocation4], 128, 128, 8
    $region29: #{tpu_custom_call.1} parent=1 // pred_fallthru
      _
    // Predicated region
    $region30: #{tpu_custom_call.1} parent=1 // pred_check
      _
    $region31: #{tpu_custom_call.1} parent=1 // pred_check_branch
      %2137 = sbr.rel (0) target = $region33
    $region32: #{tpu_custom_call.1} parent=1 // pred_region
      %2138 = dma.done [#allocation4], 4096
    $region33: #{tpu_custom_call.1} parent=1 // pred_fallthru
      _
    %2139 = vsyncpa [#allocation3], 1
    %2140 = vsyncpa [#allocation6], 1
    %2141 = vsyncpa [#allocation4], 1

</llo_original>
